<compile_context>
chip_gen: v7x
topology: tpu7x:2x2x1
jax: 0.10.0
libtpu: 0.0.40
codegen_flags: <defaults>
</compile_context>

<pallas_src>
import math

import jax
import jax.numpy as jnp
from jax import lax
from jax.experimental import pallas as pl
from jax.experimental.pallas import tpu as pltpu


_SEQ_TILE_CAP = 512  # rows per grid step; 512 * 2*head_dim * 4B is far below VMEM limits


def _round_up(x: int, m: int) -> int:
    return ((x + m - 1) // m) * m


def _tiling(s: int):
    """Pick a sublane-aligned sequence tile and the padded total length."""
    tile = min(_round_up(s, 8), _SEQ_TILE_CAP)
    s_pad = _round_up(s, tile)
    return tile, s_pad


# ---------------------------------------------------------------------------
# Pallas kernels
# ---------------------------------------------------------------------------
def _interleave(c, s, mc, ms):
    # Scatter cos/sin into the final interleaved lane order on the idle MXU:
    #   out[:, 4d+0] = c_d, out[:, 4d+1] = -s_d, out[:, 4d+2] = s_d, out[:, 4d+3] = c_d
    # mc/ms are constant 0/±1 matrices; Precision.HIGHEST keeps f32 exact.
    kw = dict(preferred_element_type=jnp.float32, precision=lax.Precision.HIGHEST)
    return jnp.dot(c, mc, **kw) + jnp.dot(s, ms, **kw)


def _rope_seq_kernel(freq_ref, mc_ref, ms_ref, out_ref):
    # forward(seqlen): positions generated in-kernel (no position DMA stream).
    ts = out_ref.shape[0]
    hd2 = freq_ref.shape[1]
    base = pl.program_id(0) * ts
    pos = (base + lax.broadcasted_iota(jnp.int32, (ts, hd2), 0)).astype(jnp.float32)
    angle = pos * freq_ref[...]                            # (ts, hd2)   VPU
    out_ref[...] = _interleave(jnp.cos(angle), jnp.sin(angle),   # EUP
                               mc_ref[...], ms_ref[...])         # MXU (idle otherwise)


def _rope_idx_kernel(pos_ref, freq_ref, mc_ref, ms_ref, out_ref):
    # forward(tok_idx): positions streamed in as a (ts, 1) f32 column.
    angle = pos_ref[...] * freq_ref[...]                   # (ts,1)*(1,hd2) -> (ts,hd2)
    out_ref[...] = _interleave(jnp.cos(angle), jnp.sin(angle),
                               mc_ref[...], ms_ref[...])


# ---------------------------------------------------------------------------
# pallas_call wrappers
# ---------------------------------------------------------------------------
def _call_seq(seqlen, freqs, mc, ms):
    hd2 = freqs.shape[1]
    tile, s_pad = _tiling(seqlen)
    grid = (s_pad // tile,)
    const = lambda i: (0, 0)
    out = pl.pallas_call(
        _rope_seq_kernel,
        out_shape=jax.ShapeDtypeStruct((s_pad, 4 * hd2), jnp.float32),
        grid_spec=pltpu.PrefetchScalarGridSpec(
            num_scalar_prefetch=0,
            grid=grid,
            in_specs=[
                pl.BlockSpec((1, hd2), const),          # freqs (loaded once)
                pl.BlockSpec((hd2, 4 * hd2), const),    # cos scatter matrix
                pl.BlockSpec((hd2, 4 * hd2), const),    # sin scatter matrix
            ],
            out_specs=pl.BlockSpec((tile, 4 * hd2), lambda i: (i, 0)),
        ),
        compiler_params=pltpu.CompilerParams(dimension_semantics=("parallel",)),
    )(freqs, mc, ms)
    return out[:seqlen]


def _call_idx(pos_col, freqs, mc, ms, tile):
    s_pad = pos_col.shape[0]
    hd2 = freqs.shape[1]
    grid = (s_pad // tile,)
    const = lambda i: (0, 0)
    return pl.pallas_call(
        _rope_idx_kernel,
        out_shape=jax.ShapeDtypeStruct((s_pad, 4 * hd2), jnp.float32),
        grid_spec=pltpu.PrefetchScalarGridSpec(
            num_scalar_prefetch=0,
            grid=grid,
            in_specs=[
                pl.BlockSpec((tile, 1), lambda i: (i, 0)),  # positions
                pl.BlockSpec((1, hd2), const),
                pl.BlockSpec((hd2, 4 * hd2), const),
                pl.BlockSpec((hd2, 4 * hd2), const),
            ],
            out_specs=pl.BlockSpec((tile, 4 * hd2), lambda i: (i, 0)),
        ),
        compiler_params=pltpu.CompilerParams(dimension_semantics=("parallel",)),
    )(pos_col, freqs, mc, ms)


# ---------------------------------------------------------------------------
# Parameter setup (plain JAX glue) — mirrors __init__ / precompute_freqs_cis
# ---------------------------------------------------------------------------
def _apply_scaling(freqs, scale_factor, low_freq_factor, high_freq_factor,
                   old_context_len):
    if scale_factor == 1:
        return freqs
    low_freq_wavelen = old_context_len / low_freq_factor
    high_freq_wavelen = old_context_len / high_freq_factor
    assert low_freq_wavelen >= high_freq_wavelen
    wavelen = 2.0 * math.pi / freqs
    smooth = (old_context_len / wavelen - low_freq_factor) / (
        high_freq_factor - low_freq_factor)
    mid = (1.0 - smooth) * freqs / scale_factor + smooth * freqs
    return jnp.where(
        wavelen < high_freq_wavelen, freqs,
        jnp.where(wavelen > low_freq_wavelen, freqs / scale_factor, mid))


class RotaryEmbedding:
    """JAX/Pallas port of the torch RotaryEmbedding module."""

    def __init__(self, theta: float, head_dim: int, max_seqlen: int = 1024,
                 scale_factor: int = 1, low_freq_factor: int = 1,
                 high_freq_factor: int = 32, old_context_len: int = 8192):
        self.theta = theta
        self.head_dim = head_dim
        self.max_seqlen = max_seqlen
        hd2 = head_dim // 2
        # base inverse frequencies: 1 / theta^(2i/dim), i = 0..dim/2-1
        idx = jnp.arange(0, head_dim, 2, dtype=jnp.float32)[:hd2]
        freqs = 1.0 / (theta ** (idx / head_dim))
        freqs = _apply_scaling(freqs, scale_factor, low_freq_factor,
                               high_freq_factor, old_context_len)
        self.freqs = freqs.reshape(1, hd2).astype(jnp.float32)

        # Constant scatter matrices for the in-kernel lane interleave:
        #   row(s,:) = cos_row @ mc + sin_row @ ms  == [c0,-s0,s0,c0, c1,-s1,s1,c1, ...]
        d = jnp.arange(hd2)
        mc = jnp.zeros((hd2, 4 * hd2), jnp.float32)
        mc = mc.at[d, 4 * d + 0].set(1.0).at[d, 4 * d + 3].set(1.0)
        ms = jnp.zeros((hd2, 4 * hd2), jnp.float32)
        ms = ms.at[d, 4 * d + 1].set(-1.0).at[d, 4 * d + 2].set(1.0)
        self.mc, self.ms = mc, ms

    def __call__(self, seqlen=None, tok_idx=None):
        assert (seqlen is not None) or (tok_idx is not None), \
            "Should provide atleast seqlen or tok_idx"
        hd2 = self.head_dim // 2
        if tok_idx is not None:
            tok_idx = jnp.asarray(tok_idx)
            idx_shape = tok_idx.shape
            # TODO(synk): positions above 2^24 lose exactness in the f32 cast.
            flat = tok_idx.reshape(-1).astype(jnp.float32)
            s = flat.shape[0]
            tile, s_pad = _tiling(s)
            pos = jnp.pad(flat, (0, s_pad - s)).reshape(s_pad, 1)
            table = _call_idx(pos, self.freqs, self.mc, self.ms, tile)[:s]
            return table.reshape(*idx_shape, hd2, 2, 2)
        s = int(seqlen)
        table = _call_seq(s, self.freqs, self.mc, self.ms)
        return table.reshape(s, hd2, 2, 2)


# pure-JAX reference for a correctness check
def _reference(positions, freqs_row):
    angle = positions.astype(jnp.float32)[:, None] * freqs_row[0][None, :]
    c, s = jnp.cos(angle), jnp.sin(angle)
    return jnp.stack([c, -s, s, c], axis=-1).reshape(*angle.shape, 2, 2)


if __name__ == "__main__":
    head_dim = 64          # 2*head_dim = 128 output lanes per row -> lane-dense stores
    max_seqlen = 1024
    rope = RotaryEmbedding(theta=10000.0, head_dim=head_dim, max_seqlen=max_seqlen)

    # forward(seqlen=...): contiguous positions, generated in-kernel.
    seqlen = 16
    out_seq = jax.block_until_ready(rope(seqlen=seqlen))
    assert out_seq.shape == (seqlen, head_dim // 2, 2, 2)
    ref_seq = _reference(jnp.arange(seqlen, dtype=jnp.float32), rope.freqs)
    assert jnp.allclose(out_seq, ref_seq, atol=1e-5, rtol=1e-5)

    # non-multiple-of-8 seqlen exercises the padded tail
    out_odd = jax.block_until_ready(rope(seqlen=13))
    assert out_odd.shape == (13, head_dim // 2, 2, 2)
    assert jnp.allclose(out_odd, ref_seq[:13], atol=1e-5, rtol=1e-5)

    # forward(tok_idx=...): arbitrary positions streamed in.
    key = jax.random.PRNGKey(0)
    tok_idx = jax.random.randint(key, (8,), 0, max_seqlen, dtype=jnp.int32)
    out_tok = jax.block_until_ready(rope(tok_idx=tok_idx))
    assert out_tok.shape == (8, head_dim // 2, 2, 2)
    ref_tok = _reference(tok_idx.astype(jnp.float32), rope.freqs)
    assert jnp.allclose(out_tok, ref_tok, atol=1e-4, rtol=1e-5)

    print("KERNEL_OK")
</pallas_src>

<mosaic_0001>
module attributes {stable_mosaic.version = 11 : i64} {
  func.func @_rope_seq_kernel(%arg0: i32, %arg1: memref<1x32xf32, #tpu.memory_space<vmem>>, %arg2: memref<32x128xf32, #tpu.memory_space<vmem>>, %arg3: memref<32x128xf32, #tpu.memory_space<vmem>>, %arg4: memref<16x128xf32, #tpu.memory_space<vmem>>) attributes {dimension_semantics = [#tpu.dimension_semantics<parallel>], iteration_bounds = array<i64: 1>, scalar_prefetch = 0 : i64, scratch_operands = 0 : i64, tpu.core_type = #tpu.core_type<tc>, window_params = [{pipeline_mode = #tpu.pipeline_mode<synchronous>, transform_indices = @transform_0, window_bounds = array<i64: 1, 32>}, {pipeline_mode = #tpu.pipeline_mode<synchronous>, transform_indices = @transform_1, window_bounds = array<i64: 32, 128>}, {pipeline_mode = #tpu.pipeline_mode<synchronous>, transform_indices = @transform_2, window_bounds = array<i64: 32, 128>}, {transform_indices = @transform_3, window_bounds = array<i64: 16, 128>}]} {
    %c16_i32 = arith.constant 16 : i32
    %0 = arith.muli %arg0, %c16_i32 : i32
    %1 = tpu.iota {dimensions = array<i32: 0>} : vector<16x32xi32>
    %2 = vector.broadcast %0 : i32 to vector<16x32xi32>
    %3 = arith.addi %2, %1 : vector<16x32xi32>
    %4 = arith.sitofp %3 : vector<16x32xi32> to vector<16x32xf32>
    %c0 = arith.constant 0 : index
    %c0_0 = arith.constant 0 : index
    %5 = vector.load %arg1[%c0, %c0_0] : memref<1x32xf32, #tpu.memory_space<vmem>>, vector<1x32xf32>
    %6 = vector.broadcast %5 : vector<1x32xf32> to vector<16x32xf32>
    %7 = arith.mulf %4, %6 : vector<16x32xf32>
    %8 = math.cos %7 : vector<16x32xf32>
    %9 = math.sin %7 : vector<16x32xf32>
    %c0_1 = arith.constant 0 : index
    %c0_2 = arith.constant 0 : index
    %10 = vector.load %arg2[%c0_1, %c0_2] : memref<32x128xf32, #tpu.memory_space<vmem>>, vector<32x128xf32>
    %c0_3 = arith.constant 0 : index
    %c0_4 = arith.constant 0 : index
    %11 = vector.load %arg3[%c0_3, %c0_4] : memref<32x128xf32, #tpu.memory_space<vmem>>, vector<32x128xf32>
    %cst = arith.constant dense<0.000000e+00> : vector<16x128xf32>
    %12 = tpu.matmul %8, %10, %cst {dimension_numbers = #tpu.dot_dimension_numbers<[1], [0], [0], [1], [0, 0, 1, 1], [], []>, precision = #tpu.contract_precision<fp32>} : vector<16x32xf32>, vector<32x128xf32>, vector<16x128xf32> -> vector<16x128xf32>
    %cst_5 = arith.constant dense<0.000000e+00> : vector<16x128xf32>
    %13 = tpu.matmul %9, %11, %cst_5 {dimension_numbers = #tpu.dot_dimension_numbers<[1], [0], [0], [1], [0, 0, 1, 1], [], []>, precision = #tpu.contract_precision<fp32>} : vector<16x32xf32>, vector<32x128xf32>, vector<16x128xf32> -> vector<16x128xf32>
    %14 = arith.addf %12, %13 : vector<16x128xf32>
    %c0_6 = arith.constant 0 : index
    %c0_7 = arith.constant 0 : index
    %15 = vector.load %arg4[%c0_6, %c0_7] : memref<16x128xf32, #tpu.memory_space<vmem>>, vector<16x128xf32>
    tpu.vector_store %arg4[%c0_6, %c0_7], %14 {strides = array<i32>} : memref<16x128xf32, #tpu.memory_space<vmem>>, vector<16x128xf32>,
    return
  }
  func.func @transform_0(%arg0: i32) -> (i32, i32) {
    %c0_i32 = arith.constant 0 : i32
    %c0_i32_0 = arith.constant 0 : i32
    %c0_i32_1 = arith.constant 0 : i32
    return %c0_i32, %c0_i32_0 : i32, i32
  }
  func.func @transform_1(%arg0: i32) -> (i32, i32) {
    %c0_i32 = arith.constant 0 : i32
    %c0_i32_0 = arith.constant 0 : i32
    %c0_i32_1 = arith.constant 0 : i32
    return %c0_i32, %c0_i32_0 : i32, i32
  }
  func.func @transform_2(%arg0: i32) -> (i32, i32) {
    %c0_i32 = arith.constant 0 : i32
    %c0_i32_0 = arith.constant 0 : i32
    %c0_i32_1 = arith.constant 0 : i32
    return %c0_i32, %c0_i32_0 : i32, i32
  }
  func.func @transform_3(%arg0: i32) -> (i32, i32) {
    %c0_i32 = arith.constant 0 : i32
    %c0_i32_0 = arith.constant 0 : i32
    return %arg0, %c0_i32 : i32, i32
  }
}

</mosaic_0001>

<llo_original>
// kernel: tpu_custom_call.1
$region0: #{tpu_custom_call.1}
  #allocation0 [shape = 'u32[]', space=smem, size = 0x4, offset = 0x4, fixed_abs, tag = 'smem constant byte address 0x4 - core index']
  #allocation1 [shape = 'u32[144,128]{1,0:T(1,128)}', space=vmem, size = 0x12000, scoped, tag = 'internal scratch']
  %s0 = inlined_call_operand.hbm [shape: f32[1,32], index: 0, kind: input, shape index: {}]
  %s1 = inlined_call_operand.hbm [shape: f32[32,128], index: 1, kind: input, shape index: {}]
  %s2 = inlined_call_operand.hbm [shape: f32[32,128], index: 2, kind: input, shape index: {}]
  %s3 = inlined_call_operand.hbm [shape: f32[16,128], index: 3, kind: output, shape index: {}]
  %s4 = sld [smem:[#allocation0]]
  $region34: #{tpu_custom_call.1} parent=0
    _
  %s6 = ssub.s32 1, %s4
  %s7 = scalar_select 0, %s6, %s4
  $region1: #{tpu_custom_call.1} parent=0
    #allocation2 [shape = 'u8[512]{0}', space=vmem, size = 0x400, scoped, tag = 'input window, operand 0, single buffered']
    #allocation3 [shape = 's32[1]{0}', space=sflag, size = 0x4, scoped, tag = 'scoped memory for tpu_custom_call.1']
    #allocation4 [shape = 's32[1]{0}', space=sflag, size = 0x4, scoped, tag = 'scoped memory for tpu_custom_call.1']
    #allocation5 [shape = 'u8[16384]{0}', space=vmem, size = 0x4000, scoped, tag = 'input window, operand 1, single buffered']
    #allocation6 [shape = 's32[1]{0}', space=sflag, size = 0x4, scoped, tag = 'scoped memory for tpu_custom_call.1']
    #allocation7 [shape = 'u8[16384]{0}', space=vmem, size = 0x4000, scoped, tag = 'input window, operand 2, single buffered']
    #allocation8 [shape = 'u8[8192]{0}', space=vmem, size = 0x2000, scoped, tag = 'output window, operand 0, single buffered']
    %8 = vsyncpa [#allocation3], 0
    %9 = vsyncpa [#allocation6], 0
    %10 = vsyncpa [#allocation4], 0
    // Predicated region
    $region2: #{tpu_custom_call.1} parent=1 // pred_check
      _
    $region3: #{tpu_custom_call.1} parent=1 // pred_check_branch
      %12 = sbr.rel (0) target = $region5
    $region4: #{tpu_custom_call.1} parent=1 // pred_region
      %s14 = ssub.s32 16, 16
      %15 = vsyncadd [#allocation3], %s14
      %s17 = sshll.u32 [#allocation2], 4
      %s18 = int_to_ptr.vmem [resolvable:$true] %s17
      %20 = dma.hbm_to_vmem [thread:$0]  %s0, 16, %s18, [#allocation3]
    $region5: #{tpu_custom_call.1} parent=1 // pred_fallthru
      _
    // Predicated region
    $region6: #{tpu_custom_call.1} parent=1 // pred_check
      _
    $region7: #{tpu_custom_call.1} parent=1 // pred_check_branch
      %22 = sbr.rel (0) target = $region9
    $region8: #{tpu_custom_call.1} parent=1 // pred_region
      %s24 = ssub.s32 512, 512
      %25 = vsyncadd [#allocation6], %s24
      %s26 = sshll.u32 [#allocation5], 4
      %s27 = int_to_ptr.vmem [resolvable:$true] %s26
      %32 = dma.hbm_to_vmem [thread:$0]  %s1, 512, %s27, [#allocation6], 128, 128, 8
    $region9: #{tpu_custom_call.1} parent=1 // pred_fallthru
      _
    // Predicated region
    $region10: #{tpu_custom_call.1} parent=1 // pred_check
      _
    $region11: #{tpu_custom_call.1} parent=1 // pred_check_branch
      %34 = sbr.rel (0) target = $region13
    $region12: #{tpu_custom_call.1} parent=1 // pred_region
      %s36 = ssub.s32 512, 512
      %37 = vsyncadd [#allocation6], %s36
      %s38 = sshll.u32 [#allocation7], 4
      %s39 = int_to_ptr.vmem [resolvable:$true] %s38
      %44 = dma.hbm_to_vmem [thread:$0]  %s2, 512, %s39, [#allocation6], 128, 128, 8
    $region13: #{tpu_custom_call.1} parent=1 // pred_fallthru
      _
    // Predicated region
    $region14: #{tpu_custom_call.1} parent=1 // pred_check
      _
    $region15: #{tpu_custom_call.1} parent=1 // pred_check_branch
      %46 = sbr.rel (0) target = $region17
    $region16: #{tpu_custom_call.1} parent=1 // pred_region
      %47 = dma.done [#allocation3], 16
    $region17: #{tpu_custom_call.1} parent=1 // pred_fallthru
      _
    // Predicated region
    $region18: #{tpu_custom_call.1} parent=1 // pred_check
      _
    $region19: #{tpu_custom_call.1} parent=1 // pred_check_branch
      %49 = sbr.rel (0) target = $region21
    $region20: #{tpu_custom_call.1} parent=1 // pred_region
      %50 = dma.done [#allocation6], 512
    $region21: #{tpu_custom_call.1} parent=1 // pred_fallthru
      _
    // Predicated region
    $region22: #{tpu_custom_call.1} parent=1 // pred_check
      _
    $region23: #{tpu_custom_call.1} parent=1 // pred_check_branch
      %52 = sbr.rel (0) target = $region25
    $region24: #{tpu_custom_call.1} parent=1 // pred_region
      %53 = dma.done [#allocation6], 512
    $region25: #{tpu_custom_call.1} parent=1 // pred_fallthru
      _
    %s54 = smul.u32 0, 16
    %v55 = vlaneseq
    %v56 = vshrl.u32 %v55, 7
    %v57 = vadd.s32 %v56, 8
    %v58 = vstv %s54
    %v59 = vadd.s32 %v58, %v56
    %v60 = vadd.s32 %v58, %v57
    %v61 = vcvt.s32.f32 %v59
    %v62 = vcvt.s32.f32 %v60
    %v63 = vld [vmem:[#allocation2] sm:$0x1]
    %v65 = vlaneseq
    %v66 = vshrl.u32 %v65, 7
    %v67 = vsub.s32 0, %v66
    %v68 = vrot.slane %v63, %v67
    %v70 = vmul.f32 %v61, %v68
    %v71 = vmul.f32 %v62, %v68
    %v72 = vand.u32 2147483647, %v70
    %vm73 = vcmp.le.f32.partialorder %v72, 0.7853982
    %vm74 = vcmp.lt.s32.totalorder %v70, 0
    %v75 = vand.u32 %v70, 2139095040
    %v76 = vshrl.u32 %v75, 23
    %v77 = vsub.s32 %v76, 127
    %v78 = vand.u32 2147483647, %v70
    %v79 = vand.u32 %v78, 8388607
    %v80 = vor.u32 %v79, 8388608
    %v81 = vsub.s32 0, %v80
    %v82 = vadd.s32 %v77, 1
    %vm83 = vcmp.gt.s32.totalorder %v82, 0
    %v84 = vsel %vm83, %v82, 0
    %v85 = vshrl.u32 %v84, 5
    %v86 = vand.u32 %v84, 31
    %v87 = vsub.s32 32, %v86
    %v88 = vshrl.u32 683565275, %v87
    %v89 = vshll.u32 683565275, %v86
    %v90 = vshrl.u32 2475754826, %v87
    %v91 = vor.u32 %v89, %v90
    %v92 = vshll.u32 2475754826, %v86
    %v93 = vshrl.u32 2131351028, %v87
    %v94 = vor.u32 %v92, %v93
    %v95 = vshll.u32 2131351028, %v86
    %v96 = vshrl.u32 2102212464, %v87
    %v97 = vor.u32 %v95, %v96
    %v98 = vshll.u32 2102212464, %v86
    %v99 = vshrl.u32 920167782, %v87
    %v100 = vor.u32 %v98, %v99
    %v101 = vshll.u32 920167782, %v86
    %v102 = vshrl.u32 1326507024, %v87
    %v103 = vor.u32 %v101, %v102
    %vm104 = vcmp.lt.s32.totalorder %v85, 1
    %vm105 = vcmp.lt.s32.totalorder %v85, 2
    %vm106 = vcmp.lt.s32.totalorder %v85, 3
    %vm107 = vcmp.lt.s32.totalorder %v85, 4
    %v108 = vsel %vm104, %v88, %v91
    %v109 = vsel %vm107, %v97, 2102212464
    %v110 = vsel %vm106, %v94, %v109
    %v111 = vsel %vm105, %v108, %v110
    %v112 = vsel %vm104, %v91, %v94
    %v113 = vsel %vm107, %v100, 920167782
    %v114 = vsel %vm106, %v97, %v113
    %v115 = vsel %vm105, %v112, %v114
    %v116 = vsel %vm104, %v94, %v97
    %v117 = vsel %vm107, %v103, 1326507024
    %v118 = vsel %vm106, %v100, %v117
    %v119 = vsel %vm105, %v116, %v118
    %v120 = vshll.u32 %v80, 8
    %v121 = vmul.u32.u64.compose %v120, %v119
    %v122 = vextract.low.u32 %v121
    %v123 = vextract.high.u32 %v121
    %v124 = vmul.u32.u64.compose %v120, %v115
    %v125 = vextract.low.u32 %v124
    %v126 = vextract.high.u32 %v124
    %v127 = vmul.u32 %v120, %v111
    %v128 = vadd.s32 %v123, %v125
    %vm129 = vc.u32 %v123, %v125
    %v130 = vadd.s32 %v126, 1
    %v131 = vsel %vm129, %v130, %v126
    %v132 = vadd.s32 %v127, %v131
    %v133 = vadd.s32 %v132, 536870912
    %v134 = vshrl.u32 %v133, 30
    %v135 = vshll.u32 %v134, 30
    %v136 = vsub.s32 %v132, %v135
    %vm137 = vcmp.lt.s32.totalorder %v136, 0
    %v138 = vsub.s32 0, %v136
    %v139 = vsel %vm137, %v138, %v136
    %v140 = vclz %v139
    %v141 = vsub.s32 %v140, 2
    %vm142 = vcmp.gt.s32.totalorder 0, %v141
    %v143 = vsel %vm142, 0, %v141
    %v144 = vsub.s32 32, %v143
    %v145 = vshll.u32 %v136, %v143
    %v146 = vshrl.u32 %v128, %v144
    %v147 = vor.u32 %v145, %v146
    %v148 = vsub.s32 4294967266, %v143
    %v149 = vadd.s32 %v148, 127
    %v150 = vshll.u32 %v149, 23
    %v151 = vor.u32 4788187, %v150
    %v152 = vand.u32 2147483647, %v151
    %v154 = vcvt.s32.f32 %v147
    %v155 = vmul.f32 %v154, %v152
    %v156 = vxor.u32 %v155, 2147483648
    %v157 = vsel %vm74, %v156, %v155
    %v158 = vsub.s32 4, %v134
    %v159 = vsel %vm74, %v158, %v134
    %v160 = vsel %vm73, %v70, %v157
    %v161 = vsel %vm73, 0, %v159
    %v162 = vcosq.f32.pop %v160
    %v163 = vsinq.f32.pop %v160
    %vm164 = vweird.f32 %v70
    %v165 = vand.u32 %v161, 3
    %vm166 = vcmp.lt.s32.totalorder %v165, 2
    %vm167 = vcmp.eq.s32.totalorder %v165, 0
    %v168 = vxor.u32 %v163, 2147483648
    %v169 = vsel %vm167, %v162, %v168
    %vm170 = vcmp.eq.s32.totalorder %v165, 2
    %v171 = vxor.u32 %v162, 2147483648
    %v172 = vsel %vm170, %v171, %v163
    %v173 = vsel %vm166, %v169, %v172
    %v174 = vsel %vm164, nan, %v173
    %v175 = vand.u32 2147483647, %v71
    %vm176 = vcmp.le.f32.partialorder %v175, 0.7853982
    %vm177 = vcmp.lt.s32.totalorder %v71, 0
    %v178 = vand.u32 %v71, 2139095040
    %v179 = vshrl.u32 %v178, 23
    %v180 = vsub.s32 %v179, 127
    %v181 = vand.u32 2147483647, %v71
    %v182 = vand.u32 %v181, 8388607
    %v183 = vor.u32 %v182, 8388608
    %v184 = vsub.s32 0, %v183
    %v185 = vadd.s32 %v180, 1
    %vm186 = vcmp.gt.s32.totalorder %v185, 0
    %v187 = vsel %vm186, %v185, 0
    %v188 = vshrl.u32 %v187, 5
    %v189 = vand.u32 %v187, 31
    %v190 = vsub.s32 32, %v189
    %v191 = vshrl.u32 683565275, %v190
    %v192 = vshll.u32 683565275, %v189
    %v193 = vshrl.u32 2475754826, %v190
    %v194 = vor.u32 %v192, %v193
    %v195 = vshll.u32 2475754826, %v189
    %v196 = vshrl.u32 2131351028, %v190
    %v197 = vor.u32 %v195, %v196
    %v198 = vshll.u32 2131351028, %v189
    %v199 = vshrl.u32 2102212464, %v190
    %v200 = vor.u32 %v198, %v199
    %v201 = vshll.u32 2102212464, %v189
    %v202 = vshrl.u32 920167782, %v190
    %v203 = vor.u32 %v201, %v202
    %v204 = vshll.u32 920167782, %v189
    %v205 = vshrl.u32 1326507024, %v190
    %v206 = vor.u32 %v204, %v205
    %vm207 = vcmp.lt.s32.totalorder %v188, 1
    %vm208 = vcmp.lt.s32.totalorder %v188, 2
    %vm209 = vcmp.lt.s32.totalorder %v188, 3
    %vm210 = vcmp.lt.s32.totalorder %v188, 4
    %v211 = vsel %vm207, %v191, %v194
    %v212 = vsel %vm210, %v200, 2102212464
    %v213 = vsel %vm209, %v197, %v212
    %v214 = vsel %vm208, %v211, %v213
    %v215 = vsel %vm207, %v194, %v197
    %v216 = vsel %vm210, %v203, 920167782
    %v217 = vsel %vm209, %v200, %v216
    %v218 = vsel %vm208, %v215, %v217
    %v219 = vsel %vm207, %v197, %v200
    %v220 = vsel %vm210, %v206, 1326507024
    %v221 = vsel %vm209, %v203, %v220
    %v222 = vsel %vm208, %v219, %v221
    %v223 = vshll.u32 %v183, 8
    %v224 = vmul.u32.u64.compose %v223, %v222
    %v225 = vextract.low.u32 %v224
    %v226 = vextract.high.u32 %v224
    %v227 = vmul.u32.u64.compose %v223, %v218
    %v228 = vextract.low.u32 %v227
    %v229 = vextract.high.u32 %v227
    %v230 = vmul.u32 %v223, %v214
    %v231 = vadd.s32 %v226, %v228
    %vm232 = vc.u32 %v226, %v228
    %v233 = vadd.s32 %v229, 1
    %v234 = vsel %vm232, %v233, %v229
    %v235 = vadd.s32 %v230, %v234
    %v236 = vadd.s32 %v235, 536870912
    %v237 = vshrl.u32 %v236, 30
    %v238 = vshll.u32 %v237, 30
    %v239 = vsub.s32 %v235, %v238
    %vm240 = vcmp.lt.s32.totalorder %v239, 0
    %v241 = vsub.s32 0, %v239
    %v242 = vsel %vm240, %v241, %v239
    %v243 = vclz %v242
    %v244 = vsub.s32 %v243, 2
    %vm245 = vcmp.gt.s32.totalorder 0, %v244
    %v246 = vsel %vm245, 0, %v244
    %v247 = vsub.s32 32, %v246
    %v248 = vshll.u32 %v239, %v246
    %v249 = vshrl.u32 %v231, %v247
    %v250 = vor.u32 %v248, %v249
    %v251 = vsub.s32 4294967266, %v246
    %v252 = vadd.s32 %v251, 127
    %v253 = vshll.u32 %v252, 23
    %v254 = vor.u32 4788187, %v253
    %v255 = vand.u32 2147483647, %v254
    %v257 = vcvt.s32.f32 %v250
    %v258 = vmul.f32 %v257, %v255
    %v259 = vxor.u32 %v258, 2147483648
    %v260 = vsel %vm177, %v259, %v258
    %v261 = vsub.s32 4, %v237
    %v262 = vsel %vm177, %v261, %v237
    %v263 = vsel %vm176, %v71, %v260
    %v264 = vsel %vm176, 0, %v262
    %v265 = vcosq.f32.pop %v263
    %v266 = vsinq.f32.pop %v263
    %vm267 = vweird.f32 %v71
    %v268 = vand.u32 %v264, 3
    %vm269 = vcmp.lt.s32.totalorder %v268, 2
    %vm270 = vcmp.eq.s32.totalorder %v268, 0
    %v271 = vxor.u32 %v266, 2147483648
    %v272 = vsel %vm270, %v265, %v271
    %vm273 = vcmp.eq.s32.totalorder %v268, 2
    %v274 = vxor.u32 %v265, 2147483648
    %v275 = vsel %vm273, %v274, %v266
    %v276 = vsel %vm269, %v272, %v275
    %v277 = vsel %vm267, nan, %v276
    %v278 = vand.u32 2147483647, %v70
    %vm279 = vcmp.le.f32.partialorder %v278, 0.7853982
    %vm280 = vcmp.lt.s32.totalorder %v70, 0
    %v281 = vand.u32 %v70, 2139095040
    %v282 = vshrl.u32 %v281, 23
    %v283 = vsub.s32 %v282, 127
    %v284 = vand.u32 2147483647, %v70
    %v285 = vand.u32 %v284, 8388607
    %v286 = vor.u32 %v285, 8388608
    %v287 = vsub.s32 0, %v286
    %v288 = vadd.s32 %v283, 1
    %vm289 = vcmp.gt.s32.totalorder %v288, 0
    %v290 = vsel %vm289, %v288, 0
    %v291 = vshrl.u32 %v290, 5
    %v292 = vand.u32 %v290, 31
    %v293 = vsub.s32 32, %v292
    %v294 = vshrl.u32 683565275, %v293
    %v295 = vshll.u32 683565275, %v292
    %v296 = vshrl.u32 2475754826, %v293
    %v297 = vor.u32 %v295, %v296
    %v298 = vshll.u32 2475754826, %v292
    %v299 = vshrl.u32 2131351028, %v293
    %v300 = vor.u32 %v298, %v299
    %v301 = vshll.u32 2131351028, %v292
    %v302 = vshrl.u32 2102212464, %v293
    %v303 = vor.u32 %v301, %v302
    %v304 = vshll.u32 2102212464, %v292
    %v305 = vshrl.u32 920167782, %v293
    %v306 = vor.u32 %v304, %v305
    %v307 = vshll.u32 920167782, %v292
    %v308 = vshrl.u32 1326507024, %v293
    %v309 = vor.u32 %v307, %v308
    %vm310 = vcmp.lt.s32.totalorder %v291, 1
    %vm311 = vcmp.lt.s32.totalorder %v291, 2
    %vm312 = vcmp.lt.s32.totalorder %v291, 3
    %vm313 = vcmp.lt.s32.totalorder %v291, 4
    %v314 = vsel %vm310, %v294, %v297
    %v315 = vsel %vm313, %v303, 2102212464
    %v316 = vsel %vm312, %v300, %v315
    %v317 = vsel %vm311, %v314, %v316
    %v318 = vsel %vm310, %v297, %v300
    %v319 = vsel %vm313, %v306, 920167782
    %v320 = vsel %vm312, %v303, %v319
    %v321 = vsel %vm311, %v318, %v320
    %v322 = vsel %vm310, %v300, %v303
    %v323 = vsel %vm313, %v309, 1326507024
    %v324 = vsel %vm312, %v306, %v323
    %v325 = vsel %vm311, %v322, %v324
    %v326 = vshll.u32 %v286, 8
    %v327 = vmul.u32.u64.compose %v326, %v325
    %v328 = vextract.low.u32 %v327
    %v329 = vextract.high.u32 %v327
    %v330 = vmul.u32.u64.compose %v326, %v321
    %v331 = vextract.low.u32 %v330
    %v332 = vextract.high.u32 %v330
    %v333 = vmul.u32 %v326, %v317
    %v334 = vadd.s32 %v329, %v331
    %vm335 = vc.u32 %v329, %v331
    %v336 = vadd.s32 %v332, 1
    %v337 = vsel %vm335, %v336, %v332
    %v338 = vadd.s32 %v333, %v337
    %v339 = vadd.s32 %v338, 536870912
    %v340 = vshrl.u32 %v339, 30
    %v341 = vshll.u32 %v340, 30
    %v342 = vsub.s32 %v338, %v341
    %vm343 = vcmp.lt.s32.totalorder %v342, 0
    %v344 = vsub.s32 0, %v342
    %v345 = vsel %vm343, %v344, %v342
    %v346 = vclz %v345
    %v347 = vsub.s32 %v346, 2
    %vm348 = vcmp.gt.s32.totalorder 0, %v347
    %v349 = vsel %vm348, 0, %v347
    %v350 = vsub.s32 32, %v349
    %v351 = vshll.u32 %v342, %v349
    %v352 = vshrl.u32 %v334, %v350
    %v353 = vor.u32 %v351, %v352
    %v354 = vsub.s32 4294967266, %v349
    %v355 = vadd.s32 %v354, 127
    %v356 = vshll.u32 %v355, 23
    %v357 = vor.u32 4788187, %v356
    %v358 = vand.u32 2147483647, %v357
    %v360 = vcvt.s32.f32 %v353
    %v361 = vmul.f32 %v360, %v358
    %v362 = vxor.u32 %v361, 2147483648
    %v363 = vsel %vm280, %v362, %v361
    %v364 = vsub.s32 4, %v340
    %v365 = vsel %vm280, %v364, %v340
    %v366 = vsel %vm279, %v70, %v363
    %v367 = vsel %vm279, 0, %v365
    %v368 = vcosq.f32.pop %v366
    %v369 = vsinq.f32.pop %v366
    %vm370 = vweird.f32 %v70
    %v371 = vadd.s32 %v367, 3
    %v372 = vand.u32 %v371, 3
    %vm373 = vcmp.lt.s32.totalorder %v372, 2
    %vm374 = vcmp.eq.s32.totalorder %v372, 0
    %v375 = vxor.u32 %v369, 2147483648
    %v376 = vsel %vm374, %v368, %v375
    %vm377 = vcmp.eq.s32.totalorder %v372, 2
    %v378 = vxor.u32 %v368, 2147483648
    %v379 = vsel %vm377, %v378, %v369
    %v380 = vsel %vm373, %v376, %v379
    %v381 = vsel %vm370, nan, %v380
    %v382 = vand.u32 2147483647, %v71
    %vm383 = vcmp.le.f32.partialorder %v382, 0.7853982
    %vm384 = vcmp.lt.s32.totalorder %v71, 0
    %v385 = vand.u32 %v71, 2139095040
    %v386 = vshrl.u32 %v385, 23
    %v387 = vsub.s32 %v386, 127
    %v388 = vand.u32 2147483647, %v71
    %v389 = vand.u32 %v388, 8388607
    %v390 = vor.u32 %v389, 8388608
    %v391 = vsub.s32 0, %v390
    %v392 = vadd.s32 %v387, 1
    %vm393 = vcmp.gt.s32.totalorder %v392, 0
    %v394 = vsel %vm393, %v392, 0
    %v395 = vshrl.u32 %v394, 5
    %v396 = vand.u32 %v394, 31
    %v397 = vsub.s32 32, %v396
    %v398 = vshrl.u32 683565275, %v397
    %v399 = vshll.u32 683565275, %v396
    %v400 = vshrl.u32 2475754826, %v397
    %v401 = vor.u32 %v399, %v400
    %v402 = vshll.u32 2475754826, %v396
    %v403 = vshrl.u32 2131351028, %v397
    %v404 = vor.u32 %v402, %v403
    %v405 = vshll.u32 2131351028, %v396
    %v406 = vshrl.u32 2102212464, %v397
    %v407 = vor.u32 %v405, %v406
    %v408 = vshll.u32 2102212464, %v396
    %v409 = vshrl.u32 920167782, %v397
    %v410 = vor.u32 %v408, %v409
    %v411 = vshll.u32 920167782, %v396
    %v412 = vshrl.u32 1326507024, %v397
    %v413 = vor.u32 %v411, %v412
    %vm414 = vcmp.lt.s32.totalorder %v395, 1
    %vm415 = vcmp.lt.s32.totalorder %v395, 2
    %vm416 = vcmp.lt.s32.totalorder %v395, 3
    %vm417 = vcmp.lt.s32.totalorder %v395, 4
    %v418 = vsel %vm414, %v398, %v401
    %v419 = vsel %vm417, %v407, 2102212464
    %v420 = vsel %vm416, %v404, %v419
    %v421 = vsel %vm415, %v418, %v420
    %v422 = vsel %vm414, %v401, %v404
    %v423 = vsel %vm417, %v410, 920167782
    %v424 = vsel %vm416, %v407, %v423
    %v425 = vsel %vm415, %v422, %v424
    %v426 = vsel %vm414, %v404, %v407
    %v427 = vsel %vm417, %v413, 1326507024
    %v428 = vsel %vm416, %v410, %v427
    %v429 = vsel %vm415, %v426, %v428
    %v430 = vshll.u32 %v390, 8
    %v431 = vmul.u32.u64.compose %v430, %v429
    %v432 = vextract.low.u32 %v431
    %v433 = vextract.high.u32 %v431
    %v434 = vmul.u32.u64.compose %v430, %v425
    %v435 = vextract.low.u32 %v434
    %v436 = vextract.high.u32 %v434
    %v437 = vmul.u32 %v430, %v421
    %v438 = vadd.s32 %v433, %v435
    %vm439 = vc.u32 %v433, %v435
    %v440 = vadd.s32 %v436, 1
    %v441 = vsel %vm439, %v440, %v436
    %v442 = vadd.s32 %v437, %v441
    %v443 = vadd.s32 %v442, 536870912
    %v444 = vshrl.u32 %v443, 30
    %v445 = vshll.u32 %v444, 30
    %v446 = vsub.s32 %v442, %v445
    %vm447 = vcmp.lt.s32.totalorder %v446, 0
    %v448 = vsub.s32 0, %v446
    %v449 = vsel %vm447, %v448, %v446
    %v450 = vclz %v449
    %v451 = vsub.s32 %v450, 2
    %vm452 = vcmp.gt.s32.totalorder 0, %v451
    %v453 = vsel %vm452, 0, %v451
    %v454 = vsub.s32 32, %v453
    %v455 = vshll.u32 %v446, %v453
    %v456 = vshrl.u32 %v438, %v454
    %v457 = vor.u32 %v455, %v456
    %v458 = vsub.s32 4294967266, %v453
    %v459 = vadd.s32 %v458, 127
    %v460 = vshll.u32 %v459, 23
    %v461 = vor.u32 4788187, %v460
    %v462 = vand.u32 2147483647, %v461
    %v464 = vcvt.s32.f32 %v457
    %v465 = vmul.f32 %v464, %v462
    %v466 = vxor.u32 %v465, 2147483648
    %v467 = vsel %vm384, %v466, %v465
    %v468 = vsub.s32 4, %v444
    %v469 = vsel %vm384, %v468, %v444
    %v470 = vsel %vm383, %v71, %v467
    %v471 = vsel %vm383, 0, %v469
    %v472 = vcosq.f32.pop %v470
    %v473 = vsinq.f32.pop %v470
    %vm474 = vweird.f32 %v71
    %v475 = vadd.s32 %v471, 3
    %v476 = vand.u32 %v475, 3
    %vm477 = vcmp.lt.s32.totalorder %v476, 2
    %vm478 = vcmp.eq.s32.totalorder %v476, 0
    %v479 = vxor.u32 %v473, 2147483648
    %v480 = vsel %vm478, %v472, %v479
    %vm481 = vcmp.eq.s32.totalorder %v476, 2
    %v482 = vxor.u32 %v472, 2147483648
    %v483 = vsel %vm481, %v482, %v473
    %v484 = vsel %vm477, %v480, %v483
    %v485 = vsel %vm474, nan, %v484
    %v486 = vld [vmem:[#allocation5] sm:$0xff]
    %v487 = vld [vmem:[#allocation5 + $0x8] sm:$0xff]
    %v488 = vld [vmem:[#allocation5 + $0x10] sm:$0xff]
    %v489 = vld [vmem:[#allocation5 + $0x18] sm:$0xff]
    %v490 = vld [vmem:[#allocation7] sm:$0xff]
    %v491 = vld [vmem:[#allocation7 + $0x8] sm:$0xff]
    %v492 = vld [vmem:[#allocation7 + $0x10] sm:$0xff]
    %v493 = vld [vmem:[#allocation7 + $0x18] sm:$0xff]
    %vm494 = vcmask 261120
    %v496 = vsel %vm494, %v381, 0
    %v499 = vsel %vm494, %v485, 0
    %501 = vmatprep.subr.mxu0 0.0
    %v502 = vand.u32 %v490, 4294901760
    %503 = vmatpush1.msra.mxu0 %v502
    %504 = vmatprep.subr.mxu0 0.0
    %v505 = vand.u32 %v491, 4294901760
    %506 = vmatpush1.msra.mxu0 %v505
    %507 = vmatprep.subr.mxu0 0.0
    %v508 = vand.u32 %v492, 4294901760
    %509 = vmatpush1.msra.mxu0 %v508
    %510 = vmatprep.subr.mxu0 0.0
    %v511 = vand.u32 %v493, 4294901760
    %512 = vmatpush1.msra.mxu0 %v511
    %513 = vmatprep.subr.mxu0 0.0
    %514 = vmatpush1.msra.mxu0 0.0
    %515 = vmatprep.subr.mxu0 0.0
    %516 = vmatpush1.msra.mxu0 0.0
    %517 = vmatprep.subr.mxu0 0.0
    %518 = vmatpush1.msra.mxu0 0.0
    %519 = vmatprep.subr.mxu0 0.0
    %520 = vmatpush1.msra.mxu0 0.0
    %521 = vmatprep.subr.mxu0 0.0
    %522 = vmatpush1.msra.mxu0 0.0
    %523 = vmatprep.subr.mxu0 0.0
    %524 = vmatpush1.msra.mxu0 0.0
    %525 = vmatprep.subr.mxu0 0.0
    %526 = vmatpush1.msra.mxu0 0.0
    %527 = vmatprep.subr.mxu0 0.0
    %528 = vmatpush1.msra.mxu0 0.0
    %529 = vmatprep.subr.mxu0 0.0
    %530 = vmatpush1.msra.mxu0 0.0
    %531 = vmatprep.subr.mxu0 0.0
    %532 = vmatpush1.msra.mxu0 0.0
    %533 = vmatprep.subr.mxu0 0.0
    %534 = vmatpush1.msra.mxu0 0.0
    %535 = vmatprep.subr.mxu0 0.0
    %536 = vmatpush1.msra.mxu0 0.0
    %537 = vmatprep.subr.mxu0 0.0
    %538 = vmatpush1.msra.mxu0 0.0
    %539 = vmatprep.subr.mxu0 0.0
    %540 = vmatpush1.msra.mxu0 0.0
    %541 = vmatprep.subr.mxu0 0.0
    %542 = vmatpush1.msra.mxu0 0.0
    %543 = vmatprep.subr.mxu0 0.0
    %544 = vmatpush1.msra.mxu0 0.0
    %545 = vmatprep.subr.mxu0 0.0
    %546 = vmatpush1.msra.mxu0 0.0
    %547 = vmatprep.subr.mxu0 0.0
    %548 = vmatpush1.msra.mxu0 0.0
    %549 = vmatprep.subr.mxu0 0.0
    %550 = vmatpush1.msra.mxu0 0.0
    %551 = vmatprep.subr.mxu0 0.0
    %552 = vmatpush1.msra.mxu0 0.0
    %553 = vmatprep.subr.mxu0 0.0
    %554 = vmatpush1.msra.mxu0 0.0
    %555 = vmatprep.subr.mxu0 0.0
    %556 = vmatpush1.msra.mxu0 0.0
    %557 = vmatprep.subr.mxu0 0.0
    %558 = vmatpush1.msra.mxu0 0.0
    %559 = vmatprep.subr.mxu0 0.0
    %560 = vmatpush1.msra.mxu0 0.0
    %561 = vmatprep.subr.mxu0 0.0
    %562 = vmatpush1.msra.mxu0 0.0
    %563 = vmatprep.subr.mxu0 0.0
    %564 = vmatpush1.msra.mxu0 0.0
    %565 = vmatprep.subr.mxu0 0.0
    %566 = vmatpush1.msra.mxu0 0.0
    %567 = vmatprep.subr.mxu0 0.0
    %568 = vmatpush1.msra.mxu0 0.0
    %569 = vmatprep.mubr.f32.mxu0 0.0
    %v570 = vand.u32 %v496, 4294901760
    %v571 = vsub.f32 %v496, %v570
    %v572 = vand.u32 %v571, 4294901760
    %v573 = vsub.f32 %v571, %v572
    %v574 = vand.u32 %v573, 4294901760
    %575 = vmatmul.mubr.f32.gmra.mrb[0].mxu0 %v574
    %v576 = vpop.f32.mrb[0].mxu0
    %v577 = vadd.f32 0.0, %v576
    %v578 = vpop.f32.mrb[0].mxu0
    %579 = vmatprep.mubr.f32.mxu0 0.0
    %v580 = vand.u32 %v499, 4294901760
    %v581 = vsub.f32 %v499, %v580
    %v582 = vand.u32 %v581, 4294901760
    %v583 = vsub.f32 %v581, %v582
    %v584 = vand.u32 %v583, 4294901760
    %585 = vmatmul.mubr.f32.gmra.mrb[0].mxu0 %v584
    %v586 = vpop.f32.mrb[0].mxu0
    %v587 = vadd.f32 0.0, %v586
    %v588 = vpop.f32.mrb[0].mxu0
    %589 = vdwg.mxu0
    %590 = vmatprep.subr.mxu0 0.0
    %v591 = vand.u32 %v490, 4294901760
    %v592 = vsub.f32 %v490, %v591
    %v593 = vand.u32 %v592, 4294901760
    %v594 = vsub.f32 %v592, %v593
    %v595 = vand.u32 %v594, 4294901760
    %596 = vmatpush1.msra.mxu0 %v595
    %597 = vmatprep.subr.mxu0 0.0
    %v598 = vand.u32 %v491, 4294901760
    %v599 = vsub.f32 %v491, %v598
    %v600 = vand.u32 %v599, 4294901760
    %v601 = vsub.f32 %v599, %v600
    %v602 = vand.u32 %v601, 4294901760
    %603 = vmatpush1.msra.mxu0 %v602
    %604 = vmatprep.subr.mxu0 0.0
    %v605 = vand.u32 %v492, 4294901760
    %v606 = vsub.f32 %v492, %v605
    %v607 = vand.u32 %v606, 4294901760
    %v608 = vsub.f32 %v606, %v607
    %v609 = vand.u32 %v608, 4294901760
    %610 = vmatpush1.msra.mxu0 %v609
    %611 = vmatprep.subr.mxu0 0.0
    %v612 = vand.u32 %v493, 4294901760
    %v613 = vsub.f32 %v493, %v612
    %v614 = vand.u32 %v613, 4294901760
    %v615 = vsub.f32 %v613, %v614
    %v616 = vand.u32 %v615, 4294901760
    %617 = vmatpush1.msra.mxu0 %v616
    %618 = vmatprep.subr.mxu0 0.0
    %619 = vmatpush1.msra.mxu0 0.0
    %620 = vmatprep.subr.mxu0 0.0
    %621 = vmatpush1.msra.mxu0 0.0
    %622 = vmatprep.subr.mxu0 0.0
    %623 = vmatpush1.msra.mxu0 0.0
    %624 = vmatprep.subr.mxu0 0.0
    %625 = vmatpush1.msra.mxu0 0.0
    %626 = vmatprep.subr.mxu0 0.0
    %627 = vmatpush1.msra.mxu0 0.0
    %628 = vmatprep.subr.mxu0 0.0
    %629 = vmatpush1.msra.mxu0 0.0
    %630 = vmatprep.subr.mxu0 0.0
    %631 = vmatpush1.msra.mxu0 0.0
    %632 = vmatprep.subr.mxu0 0.0
    %633 = vmatpush1.msra.mxu0 0.0
    %634 = vmatprep.subr.mxu0 0.0
    %635 = vmatpush1.msra.mxu0 0.0
    %636 = vmatprep.subr.mxu0 0.0
    %637 = vmatpush1.msra.mxu0 0.0
    %638 = vmatprep.subr.mxu0 0.0
    %639 = vmatpush1.msra.mxu0 0.0
    %640 = vmatprep.subr.mxu0 0.0
    %641 = vmatpush1.msra.mxu0 0.0
    %642 = vmatprep.subr.mxu0 0.0
    %643 = vmatpush1.msra.mxu0 0.0
    %644 = vmatprep.subr.mxu0 0.0
    %645 = vmatpush1.msra.mxu0 0.0
    %646 = vmatprep.subr.mxu0 0.0
    %647 = vmatpush1.msra.mxu0 0.0
    %648 = vmatprep.subr.mxu0 0.0
    %649 = vmatpush1.msra.mxu0 0.0
    %650 = vmatprep.subr.mxu0 0.0
    %651 = vmatpush1.msra.mxu0 0.0
    %652 = vmatprep.subr.mxu0 0.0
    %653 = vmatpush1.msra.mxu0 0.0
    %654 = vmatprep.subr.mxu0 0.0
    %655 = vmatpush1.msra.mxu0 0.0
    %656 = vmatprep.subr.mxu0 0.0
    %657 = vmatpush1.msra.mxu0 0.0
    %658 = vmatprep.subr.mxu0 0.0
    %659 = vmatpush1.msra.mxu0 0.0
    %660 = vmatprep.subr.mxu0 0.0
    %661 = vmatpush1.msra.mxu0 0.0
    %662 = vmatprep.subr.mxu0 0.0
    %663 = vmatpush1.msra.mxu0 0.0
    %664 = vmatprep.subr.mxu0 0.0
    %665 = vmatpush1.msra.mxu0 0.0
    %666 = vmatprep.subr.mxu0 0.0
    %667 = vmatpush1.msra.mxu0 0.0
    %668 = vmatprep.subr.mxu0 0.0
    %669 = vmatpush1.msra.mxu0 0.0
    %670 = vmatprep.subr.mxu0 0.0
    %671 = vmatpush1.msra.mxu0 0.0
    %672 = vmatprep.subr.mxu0 0.0
    %673 = vmatpush1.msra.mxu0 0.0
    %674 = vmatprep.mubr.f32.mxu0 0.0
    %v675 = vand.u32 %v496, 4294901760
    %676 = vmatmul.mubr.f32.gmra.mrb[0].mxu0 %v675
    %v677 = vpop.f32.mrb[0].mxu0
    %v678 = vadd.f32 %v577, %v677
    %v679 = vpop.f32.mrb[0].mxu0
    %680 = vmatprep.mubr.f32.mxu0 0.0
    %v681 = vand.u32 %v499, 4294901760
    %682 = vmatmul.mubr.f32.gmra.mrb[0].mxu0 %v681
    %v683 = vpop.f32.mrb[0].mxu0
    %v684 = vadd.f32 %v587, %v683
    %v685 = vpop.f32.mrb[0].mxu0
    %686 = vdwg.mxu0
    %687 = vmatprep.subr.mxu0 0.0
    %v688 = vand.u32 %v490, 4294901760
    %v689 = vsub.f32 %v490, %v688
    %690 = vmatpush1.msra.mxu0 %v689
    %691 = vmatprep.subr.mxu0 0.0
    %v692 = vand.u32 %v491, 4294901760
    %v693 = vsub.f32 %v491, %v692
    %694 = vmatpush1.msra.mxu0 %v693
    %695 = vmatprep.subr.mxu0 0.0
    %v696 = vand.u32 %v492, 4294901760
    %v697 = vsub.f32 %v492, %v696
    %698 = vmatpush1.msra.mxu0 %v697
    %699 = vmatprep.subr.mxu0 0.0
    %v700 = vand.u32 %v493, 4294901760
    %v701 = vsub.f32 %v493, %v700
    %702 = vmatpush1.msra.mxu0 %v701
    %703 = vmatprep.subr.mxu0 0.0
    %704 = vmatpush1.msra.mxu0 0.0
    %705 = vmatprep.subr.mxu0 0.0
    %706 = vmatpush1.msra.mxu0 0.0
    %707 = vmatprep.subr.mxu0 0.0
    %708 = vmatpush1.msra.mxu0 0.0
    %709 = vmatprep.subr.mxu0 0.0
    %710 = vmatpush1.msra.mxu0 0.0
    %711 = vmatprep.subr.mxu0 0.0
    %712 = vmatpush1.msra.mxu0 0.0
    %713 = vmatprep.subr.mxu0 0.0
    %714 = vmatpush1.msra.mxu0 0.0
    %715 = vmatprep.subr.mxu0 0.0
    %716 = vmatpush1.msra.mxu0 0.0
    %717 = vmatprep.subr.mxu0 0.0
    %718 = vmatpush1.msra.mxu0 0.0
    %719 = vmatprep.subr.mxu0 0.0
    %720 = vmatpush1.msra.mxu0 0.0
    %721 = vmatprep.subr.mxu0 0.0
    %722 = vmatpush1.msra.mxu0 0.0
    %723 = vmatprep.subr.mxu0 0.0
    %724 = vmatpush1.msra.mxu0 0.0
    %725 = vmatprep.subr.mxu0 0.0
    %726 = vmatpush1.msra.mxu0 0.0
    %727 = vmatprep.subr.mxu0 0.0
    %728 = vmatpush1.msra.mxu0 0.0
    %729 = vmatprep.subr.mxu0 0.0
    %730 = vmatpush1.msra.mxu0 0.0
    %731 = vmatprep.subr.mxu0 0.0
    %732 = vmatpush1.msra.mxu0 0.0
    %733 = vmatprep.subr.mxu0 0.0
    %734 = vmatpush1.msra.mxu0 0.0
    %735 = vmatprep.subr.mxu0 0.0
    %736 = vmatpush1.msra.mxu0 0.0
    %737 = vmatprep.subr.mxu0 0.0
    %738 = vmatpush1.msra.mxu0 0.0
    %739 = vmatprep.subr.mxu0 0.0
    %740 = vmatpush1.msra.mxu0 0.0
    %741 = vmatprep.subr.mxu0 0.0
    %742 = vmatpush1.msra.mxu0 0.0
    %743 = vmatprep.subr.mxu0 0.0
    %744 = vmatpush1.msra.mxu0 0.0
    %745 = vmatprep.subr.mxu0 0.0
    %746 = vmatpush1.msra.mxu0 0.0
    %747 = vmatprep.subr.mxu0 0.0
    %748 = vmatpush1.msra.mxu0 0.0
    %749 = vmatprep.subr.mxu0 0.0
    %750 = vmatpush1.msra.mxu0 0.0
    %751 = vmatprep.subr.mxu0 0.0
    %752 = vmatpush1.msra.mxu0 0.0
    %753 = vmatprep.subr.mxu0 0.0
    %754 = vmatpush1.msra.mxu0 0.0
    %755 = vmatprep.subr.mxu0 0.0
    %756 = vmatpush1.msra.mxu0 0.0
    %757 = vmatprep.subr.mxu0 0.0
    %758 = vmatpush1.msra.mxu0 0.0
    %759 = vmatprep.mubr.f32.mxu0 0.0
    %v760 = vand.u32 %v496, 4294901760
    %v761 = vsub.f32 %v496, %v760
    %762 = vmatmul.mubr.f32.gmra.mrb[0].mxu0 %v761
    %v763 = vpop.f32.mrb[0].mxu0
    %v764 = vadd.f32 %v678, %v763
    %v765 = vpop.f32.mrb[0].mxu0
    %766 = vmatprep.mubr.f32.mxu0 0.0
    %v767 = vand.u32 %v499, 4294901760
    %v768 = vsub.f32 %v499, %v767
    %769 = vmatmul.mubr.f32.gmra.mrb[0].mxu0 %v768
    %v770 = vpop.f32.mrb[0].mxu0
    %v771 = vadd.f32 %v684, %v770
    %v772 = vpop.f32.mrb[0].mxu0
    %773 = vdwg.mxu0
    %774 = vmatprep.subr.mxu0 0.0
    %v775 = vand.u32 %v490, 4294901760
    %776 = vmatpush1.msra.mxu0 %v775
    %777 = vmatprep.subr.mxu0 0.0
    %v778 = vand.u32 %v491, 4294901760
    %779 = vmatpush1.msra.mxu0 %v778
    %780 = vmatprep.subr.mxu0 0.0
    %v781 = vand.u32 %v492, 4294901760
    %782 = vmatpush1.msra.mxu0 %v781
    %783 = vmatprep.subr.mxu0 0.0
    %v784 = vand.u32 %v493, 4294901760
    %785 = vmatpush1.msra.mxu0 %v784
    %786 = vmatprep.subr.mxu0 0.0
    %787 = vmatpush1.msra.mxu0 0.0
    %788 = vmatprep.subr.mxu0 0.0
    %789 = vmatpush1.msra.mxu0 0.0
    %790 = vmatprep.subr.mxu0 0.0
    %791 = vmatpush1.msra.mxu0 0.0
    %792 = vmatprep.subr.mxu0 0.0
    %793 = vmatpush1.msra.mxu0 0.0
    %794 = vmatprep.subr.mxu0 0.0
    %795 = vmatpush1.msra.mxu0 0.0
    %796 = vmatprep.subr.mxu0 0.0
    %797 = vmatpush1.msra.mxu0 0.0
    %798 = vmatprep.subr.mxu0 0.0
    %799 = vmatpush1.msra.mxu0 0.0
    %800 = vmatprep.subr.mxu0 0.0
    %801 = vmatpush1.msra.mxu0 0.0
    %802 = vmatprep.subr.mxu0 0.0
    %803 = vmatpush1.msra.mxu0 0.0
    %804 = vmatprep.subr.mxu0 0.0
    %805 = vmatpush1.msra.mxu0 0.0
    %806 = vmatprep.subr.mxu0 0.0
    %807 = vmatpush1.msra.mxu0 0.0
    %808 = vmatprep.subr.mxu0 0.0
    %809 = vmatpush1.msra.mxu0 0.0
    %810 = vmatprep.subr.mxu0 0.0
    %811 = vmatpush1.msra.mxu0 0.0
    %812 = vmatprep.subr.mxu0 0.0
    %813 = vmatpush1.msra.mxu0 0.0
    %814 = vmatprep.subr.mxu0 0.0
    %815 = vmatpush1.msra.mxu0 0.0
    %816 = vmatprep.subr.mxu0 0.0
    %817 = vmatpush1.msra.mxu0 0.0
    %818 = vmatprep.subr.mxu0 0.0
    %819 = vmatpush1.msra.mxu0 0.0
    %820 = vmatprep.subr.mxu0 0.0
    %821 = vmatpush1.msra.mxu0 0.0
    %822 = vmatprep.subr.mxu0 0.0
    %823 = vmatpush1.msra.mxu0 0.0
    %824 = vmatprep.subr.mxu0 0.0
    %825 = vmatpush1.msra.mxu0 0.0
    %826 = vmatprep.subr.mxu0 0.0
    %827 = vmatpush1.msra.mxu0 0.0
    %828 = vmatprep.subr.mxu0 0.0
    %829 = vmatpush1.msra.mxu0 0.0
    %830 = vmatprep.subr.mxu0 0.0
    %831 = vmatpush1.msra.mxu0 0.0
    %832 = vmatprep.subr.mxu0 0.0
    %833 = vmatpush1.msra.mxu0 0.0
    %834 = vmatprep.subr.mxu0 0.0
    %835 = vmatpush1.msra.mxu0 0.0
    %836 = vmatprep.subr.mxu0 0.0
    %837 = vmatpush1.msra.mxu0 0.0
    %838 = vmatprep.subr.mxu0 0.0
    %839 = vmatpush1.msra.mxu0 0.0
    %840 = vmatprep.subr.mxu0 0.0
    %841 = vmatpush1.msra.mxu0 0.0
    %842 = vmatprep.mubr.f32.mxu0 0.0
    %v843 = vand.u32 %v496, 4294901760
    %v844 = vsub.f32 %v496, %v843
    %v845 = vand.u32 %v844, 4294901760
    %846 = vmatmul.mubr.f32.gmra.mrb[0].mxu0 %v845
    %v847 = vpop.f32.mrb[0].mxu0
    %v848 = vadd.f32 %v764, %v847
    %v849 = vpop.f32.mrb[0].mxu0
    %850 = vmatprep.mubr.f32.mxu0 0.0
    %v851 = vand.u32 %v499, 4294901760
    %v852 = vsub.f32 %v499, %v851
    %v853 = vand.u32 %v852, 4294901760
    %854 = vmatmul.mubr.f32.gmra.mrb[0].mxu0 %v853
    %v855 = vpop.f32.mrb[0].mxu0
    %v856 = vadd.f32 %v771, %v855
    %v857 = vpop.f32.mrb[0].mxu0
    %858 = vdwg.mxu0
    %859 = vmatprep.subr.mxu0 0.0
    %v860 = vand.u32 %v490, 4294901760
    %v861 = vsub.f32 %v490, %v860
    %v862 = vand.u32 %v861, 4294901760
    %863 = vmatpush1.msra.mxu0 %v862
    %864 = vmatprep.subr.mxu0 0.0
    %v865 = vand.u32 %v491, 4294901760
    %v866 = vsub.f32 %v491, %v865
    %v867 = vand.u32 %v866, 4294901760
    %868 = vmatpush1.msra.mxu0 %v867
    %869 = vmatprep.subr.mxu0 0.0
    %v870 = vand.u32 %v492, 4294901760
    %v871 = vsub.f32 %v492, %v870
    %v872 = vand.u32 %v871, 4294901760
    %873 = vmatpush1.msra.mxu0 %v872
    %874 = vmatprep.subr.mxu0 0.0
    %v875 = vand.u32 %v493, 4294901760
    %v876 = vsub.f32 %v493, %v875
    %v877 = vand.u32 %v876, 4294901760
    %878 = vmatpush1.msra.mxu0 %v877
    %879 = vmatprep.subr.mxu0 0.0
    %880 = vmatpush1.msra.mxu0 0.0
    %881 = vmatprep.subr.mxu0 0.0
    %882 = vmatpush1.msra.mxu0 0.0
    %883 = vmatprep.subr.mxu0 0.0
    %884 = vmatpush1.msra.mxu0 0.0
    %885 = vmatprep.subr.mxu0 0.0
    %886 = vmatpush1.msra.mxu0 0.0
    %887 = vmatprep.subr.mxu0 0.0
    %888 = vmatpush1.msra.mxu0 0.0
    %889 = vmatprep.subr.mxu0 0.0
    %890 = vmatpush1.msra.mxu0 0.0
    %891 = vmatprep.subr.mxu0 0.0
    %892 = vmatpush1.msra.mxu0 0.0
    %893 = vmatprep.subr.mxu0 0.0
    %894 = vmatpush1.msra.mxu0 0.0
    %895 = vmatprep.subr.mxu0 0.0
    %896 = vmatpush1.msra.mxu0 0.0
    %897 = vmatprep.subr.mxu0 0.0
    %898 = vmatpush1.msra.mxu0 0.0
    %899 = vmatprep.subr.mxu0 0.0
    %900 = vmatpush1.msra.mxu0 0.0
    %901 = vmatprep.subr.mxu0 0.0
    %902 = vmatpush1.msra.mxu0 0.0
    %903 = vmatprep.subr.mxu0 0.0
    %904 = vmatpush1.msra.mxu0 0.0
    %905 = vmatprep.subr.mxu0 0.0
    %906 = vmatpush1.msra.mxu0 0.0
    %907 = vmatprep.subr.mxu0 0.0
    %908 = vmatpush1.msra.mxu0 0.0
    %909 = vmatprep.subr.mxu0 0.0
    %910 = vmatpush1.msra.mxu0 0.0
    %911 = vmatprep.subr.mxu0 0.0
    %912 = vmatpush1.msra.mxu0 0.0
    %913 = vmatprep.subr.mxu0 0.0
    %914 = vmatpush1.msra.mxu0 0.0
    %915 = vmatprep.subr.mxu0 0.0
    %916 = vmatpush1.msra.mxu0 0.0
    %917 = vmatprep.subr.mxu0 0.0
    %918 = vmatpush1.msra.mxu0 0.0
    %919 = vmatprep.subr.mxu0 0.0
    %920 = vmatpush1.msra.mxu0 0.0
    %921 = vmatprep.subr.mxu0 0.0
    %922 = vmatpush1.msra.mxu0 0.0
    %923 = vmatprep.subr.mxu0 0.0
    %924 = vmatpush1.msra.mxu0 0.0
    %925 = vmatprep.subr.mxu0 0.0
    %926 = vmatpush1.msra.mxu0 0.0
    %927 = vmatprep.subr.mxu0 0.0
    %928 = vmatpush1.msra.mxu0 0.0
    %929 = vmatprep.subr.mxu0 0.0
    %930 = vmatpush1.msra.mxu0 0.0
    %931 = vmatprep.subr.mxu0 0.0
    %932 = vmatpush1.msra.mxu0 0.0
    %933 = vmatprep.subr.mxu0 0.0
    %934 = vmatpush1.msra.mxu0 0.0
    %935 = vmatprep.mubr.f32.mxu0 0.0
    %v936 = vand.u32 %v496, 4294901760
    %937 = vmatmul.mubr.f32.gmra.mrb[0].mxu0 %v936
    %v938 = vpop.f32.mrb[0].mxu0
    %v939 = vadd.f32 %v848, %v938
    %v940 = vpop.f32.mrb[0].mxu0
    %941 = vmatprep.mubr.f32.mxu0 0.0
    %v942 = vand.u32 %v499, 4294901760
    %943 = vmatmul.mubr.f32.gmra.mrb[0].mxu0 %v942
    %v944 = vpop.f32.mrb[0].mxu0
    %v945 = vadd.f32 %v856, %v944
    %v946 = vpop.f32.mrb[0].mxu0
    %947 = vdwg.mxu0
    %948 = vmatprep.subr.mxu0 0.0
    %v949 = vand.u32 %v490, 4294901760
    %950 = vmatpush1.msra.mxu0 %v949
    %951 = vmatprep.subr.mxu0 0.0
    %v952 = vand.u32 %v491, 4294901760
    %953 = vmatpush1.msra.mxu0 %v952
    %954 = vmatprep.subr.mxu0 0.0
    %v955 = vand.u32 %v492, 4294901760
    %956 = vmatpush1.msra.mxu0 %v955
    %957 = vmatprep.subr.mxu0 0.0
    %v958 = vand.u32 %v493, 4294901760
    %959 = vmatpush1.msra.mxu0 %v958
    %960 = vmatprep.subr.mxu0 0.0
    %961 = vmatpush1.msra.mxu0 0.0
    %962 = vmatprep.subr.mxu0 0.0
    %963 = vmatpush1.msra.mxu0 0.0
    %964 = vmatprep.subr.mxu0 0.0
    %965 = vmatpush1.msra.mxu0 0.0
    %966 = vmatprep.subr.mxu0 0.0
    %967 = vmatpush1.msra.mxu0 0.0
    %968 = vmatprep.subr.mxu0 0.0
    %969 = vmatpush1.msra.mxu0 0.0
    %970 = vmatprep.subr.mxu0 0.0
    %971 = vmatpush1.msra.mxu0 0.0
    %972 = vmatprep.subr.mxu0 0.0
    %973 = vmatpush1.msra.mxu0 0.0
    %974 = vmatprep.subr.mxu0 0.0
    %975 = vmatpush1.msra.mxu0 0.0
    %976 = vmatprep.subr.mxu0 0.0
    %977 = vmatpush1.msra.mxu0 0.0
    %978 = vmatprep.subr.mxu0 0.0
    %979 = vmatpush1.msra.mxu0 0.0
    %980 = vmatprep.subr.mxu0 0.0
    %981 = vmatpush1.msra.mxu0 0.0
    %982 = vmatprep.subr.mxu0 0.0
    %983 = vmatpush1.msra.mxu0 0.0
    %984 = vmatprep.subr.mxu0 0.0
    %985 = vmatpush1.msra.mxu0 0.0
    %986 = vmatprep.subr.mxu0 0.0
    %987 = vmatpush1.msra.mxu0 0.0
    %988 = vmatprep.subr.mxu0 0.0
    %989 = vmatpush1.msra.mxu0 0.0
    %990 = vmatprep.subr.mxu0 0.0
    %991 = vmatpush1.msra.mxu0 0.0
    %992 = vmatprep.subr.mxu0 0.0
    %993 = vmatpush1.msra.mxu0 0.0
    %994 = vmatprep.subr.mxu0 0.0
    %995 = vmatpush1.msra.mxu0 0.0
    %996 = vmatprep.subr.mxu0 0.0
    %997 = vmatpush1.msra.mxu0 0.0
    %998 = vmatprep.subr.mxu0 0.0
    %999 = vmatpush1.msra.mxu0 0.0
    %1000 = vmatprep.subr.mxu0 0.0
    %1001 = vmatpush1.msra.mxu0 0.0
    %1002 = vmatprep.subr.mxu0 0.0
    %1003 = vmatpush1.msra.mxu0 0.0
    %1004 = vmatprep.subr.mxu0 0.0
    %1005 = vmatpush1.msra.mxu0 0.0
    %1006 = vmatprep.subr.mxu0 0.0
    %1007 = vmatpush1.msra.mxu0 0.0
    %1008 = vmatprep.subr.mxu0 0.0
    %1009 = vmatpush1.msra.mxu0 0.0
    %1010 = vmatprep.subr.mxu0 0.0
    %1011 = vmatpush1.msra.mxu0 0.0
    %1012 = vmatprep.subr.mxu0 0.0
    %1013 = vmatpush1.msra.mxu0 0.0
    %1014 = vmatprep.subr.mxu0 0.0
    %1015 = vmatpush1.msra.mxu0 0.0
    %1016 = vmatprep.mubr.f32.mxu0 0.0
    %v1017 = vand.u32 %v496, 4294901760
    %1018 = vmatmul.mubr.f32.gmra.mrb[0].mxu0 %v1017
    %v1019 = vpop.f32.mrb[0].mxu0
    %v1020 = vadd.f32 %v939, %v1019
    %v1021 = vpop.f32.mrb[0].mxu0
    %1022 = vmatprep.mubr.f32.mxu0 0.0
    %v1023 = vand.u32 %v499, 4294901760
    %1024 = vmatmul.mubr.f32.gmra.mrb[0].mxu0 %v1023
    %v1025 = vpop.f32.mrb[0].mxu0
    %v1026 = vadd.f32 %v945, %v1025
    %v1027 = vpop.f32.mrb[0].mxu0
    %1028 = vdwg.mxu0
    %v1030 = vsel %vm494, %v174, 0
    %v1033 = vsel %vm494, %v277, 0
    %1035 = vmatprep.subr.mxu0 0.0
    %v1036 = vand.u32 %v486, 4294901760
    %1037 = vmatpush1.msra.mxu0 %v1036
    %1038 = vmatprep.subr.mxu0 0.0
    %v1039 = vand.u32 %v487, 4294901760
    %1040 = vmatpush1.msra.mxu0 %v1039
    %1041 = vmatprep.subr.mxu0 0.0
    %v1042 = vand.u32 %v488, 4294901760
    %1043 = vmatpush1.msra.mxu0 %v1042
    %1044 = vmatprep.subr.mxu0 0.0
    %v1045 = vand.u32 %v489, 4294901760
    %1046 = vmatpush1.msra.mxu0 %v1045
    %1047 = vmatprep.subr.mxu0 0.0
    %1048 = vmatpush1.msra.mxu0 0.0
    %1049 = vmatprep.subr.mxu0 0.0
    %1050 = vmatpush1.msra.mxu0 0.0
    %1051 = vmatprep.subr.mxu0 0.0
    %1052 = vmatpush1.msra.mxu0 0.0
    %1053 = vmatprep.subr.mxu0 0.0
    %1054 = vmatpush1.msra.mxu0 0.0
    %1055 = vmatprep.subr.mxu0 0.0
    %1056 = vmatpush1.msra.mxu0 0.0
    %1057 = vmatprep.subr.mxu0 0.0
    %1058 = vmatpush1.msra.mxu0 0.0
    %1059 = vmatprep.subr.mxu0 0.0
    %1060 = vmatpush1.msra.mxu0 0.0
    %1061 = vmatprep.subr.mxu0 0.0
    %1062 = vmatpush1.msra.mxu0 0.0
    %1063 = vmatprep.subr.mxu0 0.0
    %1064 = vmatpush1.msra.mxu0 0.0
    %1065 = vmatprep.subr.mxu0 0.0
    %1066 = vmatpush1.msra.mxu0 0.0
    %1067 = vmatprep.subr.mxu0 0.0
    %1068 = vmatpush1.msra.mxu0 0.0
    %1069 = vmatprep.subr.mxu0 0.0
    %1070 = vmatpush1.msra.mxu0 0.0
    %1071 = vmatprep.subr.mxu0 0.0
    %1072 = vmatpush1.msra.mxu0 0.0
    %1073 = vmatprep.subr.mxu0 0.0
    %1074 = vmatpush1.msra.mxu0 0.0
    %1075 = vmatprep.subr.mxu0 0.0
    %1076 = vmatpush1.msra.mxu0 0.0
    %1077 = vmatprep.subr.mxu0 0.0
    %1078 = vmatpush1.msra.mxu0 0.0
    %1079 = vmatprep.subr.mxu0 0.0
    %1080 = vmatpush1.msra.mxu0 0.0
    %1081 = vmatprep.subr.mxu0 0.0
    %1082 = vmatpush1.msra.mxu0 0.0
    %1083 = vmatprep.subr.mxu0 0.0
    %1084 = vmatpush1.msra.mxu0 0.0
    %1085 = vmatprep.subr.mxu0 0.0
    %1086 = vmatpush1.msra.mxu0 0.0
    %1087 = vmatprep.subr.mxu0 0.0
    %1088 = vmatpush1.msra.mxu0 0.0
    %1089 = vmatprep.subr.mxu0 0.0
    %1090 = vmatpush1.msra.mxu0 0.0
    %1091 = vmatprep.subr.mxu0 0.0
    %1092 = vmatpush1.msra.mxu0 0.0
    %1093 = vmatprep.subr.mxu0 0.0
    %1094 = vmatpush1.msra.mxu0 0.0
    %1095 = vmatprep.subr.mxu0 0.0
    %1096 = vmatpush1.msra.mxu0 0.0
    %1097 = vmatprep.subr.mxu0 0.0
    %1098 = vmatpush1.msra.mxu0 0.0
    %1099 = vmatprep.subr.mxu0 0.0
    %1100 = vmatpush1.msra.mxu0 0.0
    %1101 = vmatprep.subr.mxu0 0.0
    %1102 = vmatpush1.msra.mxu0 0.0
    %1103 = vmatprep.mubr.f32.mxu0 0.0
    %v1104 = vand.u32 %v1030, 4294901760
    %v1105 = vsub.f32 %v1030, %v1104
    %v1106 = vand.u32 %v1105, 4294901760
    %v1107 = vsub.f32 %v1105, %v1106
    %v1108 = vand.u32 %v1107, 4294901760
    %1109 = vmatmul.mubr.f32.gmra.mrb[0].mxu0 %v1108
    %v1110 = vpop.f32.mrb[0].mxu0
    %v1111 = vadd.f32 %v1020, %v1110
    %v1112 = vpop.f32.mrb[0].mxu0
    %1113 = vmatprep.mubr.f32.mxu0 0.0
    %v1114 = vand.u32 %v1033, 4294901760
    %v1115 = vsub.f32 %v1033, %v1114
    %v1116 = vand.u32 %v1115, 4294901760
    %v1117 = vsub.f32 %v1115, %v1116
    %v1118 = vand.u32 %v1117, 4294901760
    %1119 = vmatmul.mubr.f32.gmra.mrb[0].mxu0 %v1118
    %v1120 = vpop.f32.mrb[0].mxu0
    %v1121 = vadd.f32 %v1026, %v1120
    %v1122 = vpop.f32.mrb[0].mxu0
    %1123 = vdwg.mxu0
    %1124 = vmatprep.subr.mxu0 0.0
    %v1125 = vand.u32 %v486, 4294901760
    %v1126 = vsub.f32 %v486, %v1125
    %v1127 = vand.u32 %v1126, 4294901760
    %v1128 = vsub.f32 %v1126, %v1127
    %v1129 = vand.u32 %v1128, 4294901760
    %1130 = vmatpush1.msra.mxu0 %v1129
    %1131 = vmatprep.subr.mxu0 0.0
    %v1132 = vand.u32 %v487, 4294901760
    %v1133 = vsub.f32 %v487, %v1132
    %v1134 = vand.u32 %v1133, 4294901760
    %v1135 = vsub.f32 %v1133, %v1134
    %v1136 = vand.u32 %v1135, 4294901760
    %1137 = vmatpush1.msra.mxu0 %v1136
    %1138 = vmatprep.subr.mxu0 0.0
    %v1139 = vand.u32 %v488, 4294901760
    %v1140 = vsub.f32 %v488, %v1139
    %v1141 = vand.u32 %v1140, 4294901760
    %v1142 = vsub.f32 %v1140, %v1141
    %v1143 = vand.u32 %v1142, 4294901760
    %1144 = vmatpush1.msra.mxu0 %v1143
    %1145 = vmatprep.subr.mxu0 0.0
    %v1146 = vand.u32 %v489, 4294901760
    %v1147 = vsub.f32 %v489, %v1146
    %v1148 = vand.u32 %v1147, 4294901760
    %v1149 = vsub.f32 %v1147, %v1148
    %v1150 = vand.u32 %v1149, 4294901760
    %1151 = vmatpush1.msra.mxu0 %v1150
    %1152 = vmatprep.subr.mxu0 0.0
    %1153 = vmatpush1.msra.mxu0 0.0
    %1154 = vmatprep.subr.mxu0 0.0
    %1155 = vmatpush1.msra.mxu0 0.0
    %1156 = vmatprep.subr.mxu0 0.0
    %1157 = vmatpush1.msra.mxu0 0.0
    %1158 = vmatprep.subr.mxu0 0.0
    %1159 = vmatpush1.msra.mxu0 0.0
    %1160 = vmatprep.subr.mxu0 0.0
    %1161 = vmatpush1.msra.mxu0 0.0
    %1162 = vmatprep.subr.mxu0 0.0
    %1163 = vmatpush1.msra.mxu0 0.0
    %1164 = vmatprep.subr.mxu0 0.0
    %1165 = vmatpush1.msra.mxu0 0.0
    %1166 = vmatprep.subr.mxu0 0.0
    %1167 = vmatpush1.msra.mxu0 0.0
    %1168 = vmatprep.subr.mxu0 0.0
    %1169 = vmatpush1.msra.mxu0 0.0
    %1170 = vmatprep.subr.mxu0 0.0
    %1171 = vmatpush1.msra.mxu0 0.0
    %1172 = vmatprep.subr.mxu0 0.0
    %1173 = vmatpush1.msra.mxu0 0.0
    %1174 = vmatprep.subr.mxu0 0.0
    %1175 = vmatpush1.msra.mxu0 0.0
    %1176 = vmatprep.subr.mxu0 0.0
    %1177 = vmatpush1.msra.mxu0 0.0
    %1178 = vmatprep.subr.mxu0 0.0
    %1179 = vmatpush1.msra.mxu0 0.0
    %1180 = vmatprep.subr.mxu0 0.0
    %1181 = vmatpush1.msra.mxu0 0.0
    %1182 = vmatprep.subr.mxu0 0.0
    %1183 = vmatpush1.msra.mxu0 0.0
    %1184 = vmatprep.subr.mxu0 0.0
    %1185 = vmatpush1.msra.mxu0 0.0
    %1186 = vmatprep.subr.mxu0 0.0
    %1187 = vmatpush1.msra.mxu0 0.0
    %1188 = vmatprep.subr.mxu0 0.0
    %1189 = vmatpush1.msra.mxu0 0.0
    %1190 = vmatprep.subr.mxu0 0.0
    %1191 = vmatpush1.msra.mxu0 0.0
    %1192 = vmatprep.subr.mxu0 0.0
    %1193 = vmatpush1.msra.mxu0 0.0
    %1194 = vmatprep.subr.mxu0 0.0
    %1195 = vmatpush1.msra.mxu0 0.0
    %1196 = vmatprep.subr.mxu0 0.0
    %1197 = vmatpush1.msra.mxu0 0.0
    %1198 = vmatprep.subr.mxu0 0.0
    %1199 = vmatpush1.msra.mxu0 0.0
    %1200 = vmatprep.subr.mxu0 0.0
    %1201 = vmatpush1.msra.mxu0 0.0
    %1202 = vmatprep.subr.mxu0 0.0
    %1203 = vmatpush1.msra.mxu0 0.0
    %1204 = vmatprep.subr.mxu0 0.0
    %1205 = vmatpush1.msra.mxu0 0.0
    %1206 = vmatprep.subr.mxu0 0.0
    %1207 = vmatpush1.msra.mxu0 0.0
    %1208 = vmatprep.mubr.f32.mxu0 0.0
    %v1209 = vand.u32 %v1030, 4294901760
    %1210 = vmatmul.mubr.f32.gmra.mrb[0].mxu0 %v1209
    %v1211 = vpop.f32.mrb[0].mxu0
    %v1212 = vadd.f32 %v1111, %v1211
    %v1213 = vpop.f32.mrb[0].mxu0
    %1214 = vmatprep.mubr.f32.mxu0 0.0
    %v1215 = vand.u32 %v1033, 4294901760
    %1216 = vmatmul.mubr.f32.gmra.mrb[0].mxu0 %v1215
    %v1217 = vpop.f32.mrb[0].mxu0
    %v1218 = vadd.f32 %v1121, %v1217
    %v1219 = vpop.f32.mrb[0].mxu0
    %1220 = vdwg.mxu0
    %1221 = vmatprep.subr.mxu0 0.0
    %v1222 = vand.u32 %v486, 4294901760
    %v1223 = vsub.f32 %v486, %v1222
    %1224 = vmatpush1.msra.mxu0 %v1223
    %1225 = vmatprep.subr.mxu0 0.0
    %v1226 = vand.u32 %v487, 4294901760
    %v1227 = vsub.f32 %v487, %v1226
    %1228 = vmatpush1.msra.mxu0 %v1227
    %1229 = vmatprep.subr.mxu0 0.0
    %v1230 = vand.u32 %v488, 4294901760
    %v1231 = vsub.f32 %v488, %v1230
    %1232 = vmatpush1.msra.mxu0 %v1231
    %1233 = vmatprep.subr.mxu0 0.0
    %v1234 = vand.u32 %v489, 4294901760
    %v1235 = vsub.f32 %v489, %v1234
    %1236 = vmatpush1.msra.mxu0 %v1235
    %1237 = vmatprep.subr.mxu0 0.0
    %1238 = vmatpush1.msra.mxu0 0.0
    %1239 = vmatprep.subr.mxu0 0.0
    %1240 = vmatpush1.msra.mxu0 0.0
    %1241 = vmatprep.subr.mxu0 0.0
    %1242 = vmatpush1.msra.mxu0 0.0
    %1243 = vmatprep.subr.mxu0 0.0
    %1244 = vmatpush1.msra.mxu0 0.0
    %1245 = vmatprep.subr.mxu0 0.0
    %1246 = vmatpush1.msra.mxu0 0.0
    %1247 = vmatprep.subr.mxu0 0.0
    %1248 = vmatpush1.msra.mxu0 0.0
    %1249 = vmatprep.subr.mxu0 0.0
    %1250 = vmatpush1.msra.mxu0 0.0
    %1251 = vmatprep.subr.mxu0 0.0
    %1252 = vmatpush1.msra.mxu0 0.0
    %1253 = vmatprep.subr.mxu0 0.0
    %1254 = vmatpush1.msra.mxu0 0.0
    %1255 = vmatprep.subr.mxu0 0.0
    %1256 = vmatpush1.msra.mxu0 0.0
    %1257 = vmatprep.subr.mxu0 0.0
    %1258 = vmatpush1.msra.mxu0 0.0
    %1259 = vmatprep.subr.mxu0 0.0
    %1260 = vmatpush1.msra.mxu0 0.0
    %1261 = vmatprep.subr.mxu0 0.0
    %1262 = vmatpush1.msra.mxu0 0.0
    %1263 = vmatprep.subr.mxu0 0.0
    %1264 = vmatpush1.msra.mxu0 0.0
    %1265 = vmatprep.subr.mxu0 0.0
    %1266 = vmatpush1.msra.mxu0 0.0
    %1267 = vmatprep.subr.mxu0 0.0
    %1268 = vmatpush1.msra.mxu0 0.0
    %1269 = vmatprep.subr.mxu0 0.0
    %1270 = vmatpush1.msra.mxu0 0.0
    %1271 = vmatprep.subr.mxu0 0.0
    %1272 = vmatpush1.msra.mxu0 0.0
    %1273 = vmatprep.subr.mxu0 0.0
    %1274 = vmatpush1.msra.mxu0 0.0
    %1275 = vmatprep.subr.mxu0 0.0
    %1276 = vmatpush1.msra.mxu0 0.0
    %1277 = vmatprep.subr.mxu0 0.0
    %1278 = vmatpush1.msra.mxu0 0.0
    %1279 = vmatprep.subr.mxu0 0.0
    %1280 = vmatpush1.msra.mxu0 0.0
    %1281 = vmatprep.subr.mxu0 0.0
    %1282 = vmatpush1.msra.mxu0 0.0
    %1283 = vmatprep.subr.mxu0 0.0
    %1284 = vmatpush1.msra.mxu0 0.0
    %1285 = vmatprep.subr.mxu0 0.0
    %1286 = vmatpush1.msra.mxu0 0.0
    %1287 = vmatprep.subr.mxu0 0.0
    %1288 = vmatpush1.msra.mxu0 0.0
    %1289 = vmatprep.subr.mxu0 0.0
    %1290 = vmatpush1.msra.mxu0 0.0
    %1291 = vmatprep.subr.mxu0 0.0
    %1292 = vmatpush1.msra.mxu0 0.0
    %1293 = vmatprep.mubr.f32.mxu0 0.0
    %v1294 = vand.u32 %v1030, 4294901760
    %v1295 = vsub.f32 %v1030, %v1294
    %1296 = vmatmul.mubr.f32.gmra.mrb[0].mxu0 %v1295
    %v1297 = vpop.f32.mrb[0].mxu0
    %v1298 = vadd.f32 %v1212, %v1297
    %v1299 = vpop.f32.mrb[0].mxu0
    %1300 = vmatprep.mubr.f32.mxu0 0.0
    %v1301 = vand.u32 %v1033, 4294901760
    %v1302 = vsub.f32 %v1033, %v1301
    %1303 = vmatmul.mubr.f32.gmra.mrb[0].mxu0 %v1302
    %v1304 = vpop.f32.mrb[0].mxu0
    %v1305 = vadd.f32 %v1218, %v1304
    %v1306 = vpop.f32.mrb[0].mxu0
    %1307 = vdwg.mxu0
    %1308 = vmatprep.subr.mxu0 0.0
    %v1309 = vand.u32 %v486, 4294901760
    %1310 = vmatpush1.msra.mxu0 %v1309
    %1311 = vmatprep.subr.mxu0 0.0
    %v1312 = vand.u32 %v487, 4294901760
    %1313 = vmatpush1.msra.mxu0 %v1312
    %1314 = vmatprep.subr.mxu0 0.0
    %v1315 = vand.u32 %v488, 4294901760
    %1316 = vmatpush1.msra.mxu0 %v1315
    %1317 = vmatprep.subr.mxu0 0.0
    %v1318 = vand.u32 %v489, 4294901760
    %1319 = vmatpush1.msra.mxu0 %v1318
    %1320 = vmatprep.subr.mxu0 0.0
    %1321 = vmatpush1.msra.mxu0 0.0
    %1322 = vmatprep.subr.mxu0 0.0
    %1323 = vmatpush1.msra.mxu0 0.0
    %1324 = vmatprep.subr.mxu0 0.0
    %1325 = vmatpush1.msra.mxu0 0.0
    %1326 = vmatprep.subr.mxu0 0.0
    %1327 = vmatpush1.msra.mxu0 0.0
    %1328 = vmatprep.subr.mxu0 0.0
    %1329 = vmatpush1.msra.mxu0 0.0
    %1330 = vmatprep.subr.mxu0 0.0
    %1331 = vmatpush1.msra.mxu0 0.0
    %1332 = vmatprep.subr.mxu0 0.0
    %1333 = vmatpush1.msra.mxu0 0.0
    %1334 = vmatprep.subr.mxu0 0.0
    %1335 = vmatpush1.msra.mxu0 0.0
    %1336 = vmatprep.subr.mxu0 0.0
    %1337 = vmatpush1.msra.mxu0 0.0
    %1338 = vmatprep.subr.mxu0 0.0
    %1339 = vmatpush1.msra.mxu0 0.0
    %1340 = vmatprep.subr.mxu0 0.0
    %1341 = vmatpush1.msra.mxu0 0.0
    %1342 = vmatprep.subr.mxu0 0.0
    %1343 = vmatpush1.msra.mxu0 0.0
    %1344 = vmatprep.subr.mxu0 0.0
    %1345 = vmatpush1.msra.mxu0 0.0
    %1346 = vmatprep.subr.mxu0 0.0
    %1347 = vmatpush1.msra.mxu0 0.0
    %1348 = vmatprep.subr.mxu0 0.0
    %1349 = vmatpush1.msra.mxu0 0.0
    %1350 = vmatprep.subr.mxu0 0.0
    %1351 = vmatpush1.msra.mxu0 0.0
    %1352 = vmatprep.subr.mxu0 0.0
    %1353 = vmatpush1.msra.mxu0 0.0
    %1354 = vmatprep.subr.mxu0 0.0
    %1355 = vmatpush1.msra.mxu0 0.0
    %1356 = vmatprep.subr.mxu0 0.0
    %1357 = vmatpush1.msra.mxu0 0.0
    %1358 = vmatprep.subr.mxu0 0.0
    %1359 = vmatpush1.msra.mxu0 0.0
    %1360 = vmatprep.subr.mxu0 0.0
    %1361 = vmatpush1.msra.mxu0 0.0
    %1362 = vmatprep.subr.mxu0 0.0
    %1363 = vmatpush1.msra.mxu0 0.0
    %1364 = vmatprep.subr.mxu0 0.0
    %1365 = vmatpush1.msra.mxu0 0.0
    %1366 = vmatprep.subr.mxu0 0.0
    %1367 = vmatpush1.msra.mxu0 0.0
    %1368 = vmatprep.subr.mxu0 0.0
    %1369 = vmatpush1.msra.mxu0 0.0
    %1370 = vmatprep.subr.mxu0 0.0
    %1371 = vmatpush1.msra.mxu0 0.0
    %1372 = vmatprep.subr.mxu0 0.0
    %1373 = vmatpush1.msra.mxu0 0.0
    %1374 = vmatprep.subr.mxu0 0.0
    %1375 = vmatpush1.msra.mxu0 0.0
    %1376 = vmatprep.mubr.f32.mxu0 0.0
    %v1377 = vand.u32 %v1030, 4294901760
    %v1378 = vsub.f32 %v1030, %v1377
    %v1379 = vand.u32 %v1378, 4294901760
    %1380 = vmatmul.mubr.f32.gmra.mrb[0].mxu0 %v1379
    %v1381 = vpop.f32.mrb[0].mxu0
    %v1382 = vadd.f32 %v1298, %v1381
    %v1383 = vpop.f32.mrb[0].mxu0
    %1384 = vmatprep.mubr.f32.mxu0 0.0
    %v1385 = vand.u32 %v1033, 4294901760
    %v1386 = vsub.f32 %v1033, %v1385
    %v1387 = vand.u32 %v1386, 4294901760
    %1388 = vmatmul.mubr.f32.gmra.mrb[0].mxu0 %v1387
    %v1389 = vpop.f32.mrb[0].mxu0
    %v1390 = vadd.f32 %v1305, %v1389
    %v1391 = vpop.f32.mrb[0].mxu0
    %1392 = vdwg.mxu0
    %1393 = vmatprep.subr.mxu0 0.0
    %v1394 = vand.u32 %v486, 4294901760
    %v1395 = vsub.f32 %v486, %v1394
    %v1396 = vand.u32 %v1395, 4294901760
    %1397 = vmatpush1.msra.mxu0 %v1396
    %1398 = vmatprep.subr.mxu0 0.0
    %v1399 = vand.u32 %v487, 4294901760
    %v1400 = vsub.f32 %v487, %v1399
    %v1401 = vand.u32 %v1400, 4294901760
    %1402 = vmatpush1.msra.mxu0 %v1401
    %1403 = vmatprep.subr.mxu0 0.0
    %v1404 = vand.u32 %v488, 4294901760
    %v1405 = vsub.f32 %v488, %v1404
    %v1406 = vand.u32 %v1405, 4294901760
    %1407 = vmatpush1.msra.mxu0 %v1406
    %1408 = vmatprep.subr.mxu0 0.0
    %v1409 = vand.u32 %v489, 4294901760
    %v1410 = vsub.f32 %v489, %v1409
    %v1411 = vand.u32 %v1410, 4294901760
    %1412 = vmatpush1.msra.mxu0 %v1411
    %1413 = vmatprep.subr.mxu0 0.0
    %1414 = vmatpush1.msra.mxu0 0.0
    %1415 = vmatprep.subr.mxu0 0.0
    %1416 = vmatpush1.msra.mxu0 0.0
    %1417 = vmatprep.subr.mxu0 0.0
    %1418 = vmatpush1.msra.mxu0 0.0
    %1419 = vmatprep.subr.mxu0 0.0
    %1420 = vmatpush1.msra.mxu0 0.0
    %1421 = vmatprep.subr.mxu0 0.0
    %1422 = vmatpush1.msra.mxu0 0.0
    %1423 = vmatprep.subr.mxu0 0.0
    %1424 = vmatpush1.msra.mxu0 0.0
    %1425 = vmatprep.subr.mxu0 0.0
    %1426 = vmatpush1.msra.mxu0 0.0
    %1427 = vmatprep.subr.mxu0 0.0
    %1428 = vmatpush1.msra.mxu0 0.0
    %1429 = vmatprep.subr.mxu0 0.0
    %1430 = vmatpush1.msra.mxu0 0.0
    %1431 = vmatprep.subr.mxu0 0.0
    %1432 = vmatpush1.msra.mxu0 0.0
    %1433 = vmatprep.subr.mxu0 0.0
    %1434 = vmatpush1.msra.mxu0 0.0
    %1435 = vmatprep.subr.mxu0 0.0
    %1436 = vmatpush1.msra.mxu0 0.0
    %1437 = vmatprep.subr.mxu0 0.0
    %1438 = vmatpush1.msra.mxu0 0.0
    %1439 = vmatprep.subr.mxu0 0.0
    %1440 = vmatpush1.msra.mxu0 0.0
    %1441 = vmatprep.subr.mxu0 0.0
    %1442 = vmatpush1.msra.mxu0 0.0
    %1443 = vmatprep.subr.mxu0 0.0
    %1444 = vmatpush1.msra.mxu0 0.0
    %1445 = vmatprep.subr.mxu0 0.0
    %1446 = vmatpush1.msra.mxu0 0.0
    %1447 = vmatprep.subr.mxu0 0.0
    %1448 = vmatpush1.msra.mxu0 0.0
    %1449 = vmatprep.subr.mxu0 0.0
    %1450 = vmatpush1.msra.mxu0 0.0
    %1451 = vmatprep.subr.mxu0 0.0
    %1452 = vmatpush1.msra.mxu0 0.0
    %1453 = vmatprep.subr.mxu0 0.0
    %1454 = vmatpush1.msra.mxu0 0.0
    %1455 = vmatprep.subr.mxu0 0.0
    %1456 = vmatpush1.msra.mxu0 0.0
    %1457 = vmatprep.subr.mxu0 0.0
    %1458 = vmatpush1.msra.mxu0 0.0
    %1459 = vmatprep.subr.mxu0 0.0
    %1460 = vmatpush1.msra.mxu0 0.0
    %1461 = vmatprep.subr.mxu0 0.0
    %1462 = vmatpush1.msra.mxu0 0.0
    %1463 = vmatprep.subr.mxu0 0.0
    %1464 = vmatpush1.msra.mxu0 0.0
    %1465 = vmatprep.subr.mxu0 0.0
    %1466 = vmatpush1.msra.mxu0 0.0
    %1467 = vmatprep.subr.mxu0 0.0
    %1468 = vmatpush1.msra.mxu0 0.0
    %1469 = vmatprep.mubr.f32.mxu0 0.0
    %v1470 = vand.u32 %v1030, 4294901760
    %1471 = vmatmul.mubr.f32.gmra.mrb[0].mxu0 %v1470
    %v1472 = vpop.f32.mrb[0].mxu0
    %v1473 = vadd.f32 %v1382, %v1472
    %v1474 = vpop.f32.mrb[0].mxu0
    %1475 = vmatprep.mubr.f32.mxu0 0.0
    %v1476 = vand.u32 %v1033, 4294901760
    %1477 = vmatmul.mubr.f32.gmra.mrb[0].mxu0 %v1476
    %v1478 = vpop.f32.mrb[0].mxu0
    %v1479 = vadd.f32 %v1390, %v1478
    %v1480 = vpop.f32.mrb[0].mxu0
    %1481 = vdwg.mxu0
    %1482 = vmatprep.subr.mxu0 0.0
    %v1483 = vand.u32 %v486, 4294901760
    %1484 = vmatpush1.msra.mxu0 %v1483
    %1485 = vmatprep.subr.mxu0 0.0
    %v1486 = vand.u32 %v487, 4294901760
    %1487 = vmatpush1.msra.mxu0 %v1486
    %1488 = vmatprep.subr.mxu0 0.0
    %v1489 = vand.u32 %v488, 4294901760
    %1490 = vmatpush1.msra.mxu0 %v1489
    %1491 = vmatprep.subr.mxu0 0.0
    %v1492 = vand.u32 %v489, 4294901760
    %1493 = vmatpush1.msra.mxu0 %v1492
    %1494 = vmatprep.subr.mxu0 0.0
    %1495 = vmatpush1.msra.mxu0 0.0
    %1496 = vmatprep.subr.mxu0 0.0
    %1497 = vmatpush1.msra.mxu0 0.0
    %1498 = vmatprep.subr.mxu0 0.0
    %1499 = vmatpush1.msra.mxu0 0.0
    %1500 = vmatprep.subr.mxu0 0.0
    %1501 = vmatpush1.msra.mxu0 0.0
    %1502 = vmatprep.subr.mxu0 0.0
    %1503 = vmatpush1.msra.mxu0 0.0
    %1504 = vmatprep.subr.mxu0 0.0
    %1505 = vmatpush1.msra.mxu0 0.0
    %1506 = vmatprep.subr.mxu0 0.0
    %1507 = vmatpush1.msra.mxu0 0.0
    %1508 = vmatprep.subr.mxu0 0.0
    %1509 = vmatpush1.msra.mxu0 0.0
    %1510 = vmatprep.subr.mxu0 0.0
    %1511 = vmatpush1.msra.mxu0 0.0
    %1512 = vmatprep.subr.mxu0 0.0
    %1513 = vmatpush1.msra.mxu0 0.0
    %1514 = vmatprep.subr.mxu0 0.0
    %1515 = vmatpush1.msra.mxu0 0.0
    %1516 = vmatprep.subr.mxu0 0.0
    %1517 = vmatpush1.msra.mxu0 0.0
    %1518 = vmatprep.subr.mxu0 0.0
    %1519 = vmatpush1.msra.mxu0 0.0
    %1520 = vmatprep.subr.mxu0 0.0
    %1521 = vmatpush1.msra.mxu0 0.0
    %1522 = vmatprep.subr.mxu0 0.0
    %1523 = vmatpush1.msra.mxu0 0.0
    %1524 = vmatprep.subr.mxu0 0.0
    %1525 = vmatpush1.msra.mxu0 0.0
    %1526 = vmatprep.subr.mxu0 0.0
    %1527 = vmatpush1.msra.mxu0 0.0
    %1528 = vmatprep.subr.mxu0 0.0
    %1529 = vmatpush1.msra.mxu0 0.0
    %1530 = vmatprep.subr.mxu0 0.0
    %1531 = vmatpush1.msra.mxu0 0.0
    %1532 = vmatprep.subr.mxu0 0.0
    %1533 = vmatpush1.msra.mxu0 0.0
    %1534 = vmatprep.subr.mxu0 0.0
    %1535 = vmatpush1.msra.mxu0 0.0
    %1536 = vmatprep.subr.mxu0 0.0
    %1537 = vmatpush1.msra.mxu0 0.0
    %1538 = vmatprep.subr.mxu0 0.0
    %1539 = vmatpush1.msra.mxu0 0.0
    %1540 = vmatprep.subr.mxu0 0.0
    %1541 = vmatpush1.msra.mxu0 0.0
    %1542 = vmatprep.subr.mxu0 0.0
    %1543 = vmatpush1.msra.mxu0 0.0
    %1544 = vmatprep.subr.mxu0 0.0
    %1545 = vmatpush1.msra.mxu0 0.0
    %1546 = vmatprep.subr.mxu0 0.0
    %1547 = vmatpush1.msra.mxu0 0.0
    %1548 = vmatprep.subr.mxu0 0.0
    %1549 = vmatpush1.msra.mxu0 0.0
    %1550 = vmatprep.mubr.f32.mxu0 0.0
    %v1551 = vand.u32 %v1030, 4294901760
    %1552 = vmatmul.mubr.f32.gmra.mrb[0].mxu0 %v1551
    %v1553 = vpop.f32.mrb[0].mxu0
    %v1554 = vadd.f32 %v1473, %v1553
    %v1555 = vpop.f32.mrb[0].mxu0
    %1556 = vmatprep.mubr.f32.mxu0 0.0
    %v1557 = vand.u32 %v1033, 4294901760
    %1558 = vmatmul.mubr.f32.gmra.mrb[0].mxu0 %v1557
    %v1559 = vpop.f32.mrb[0].mxu0
    %v1560 = vadd.f32 %v1479, %v1559
    %v1561 = vpop.f32.mrb[0].mxu0
    %1562 = vdwg.mxu0
    %1563 = vst [vmem:[#allocation8] sm:$0xff] %v1554
    %1564 = vst [vmem:[#allocation8 + $0x8] sm:$0xff] %v1560
    // Predicated region
    $region26: #{tpu_custom_call.1} parent=1 // pred_check
      _
    $region27: #{tpu_custom_call.1} parent=1 // pred_check_branch
      %1566 = sbr.rel (0) target = $region29
    $region28: #{tpu_custom_call.1} parent=1 // pred_region
      %s1568 = ssub.s32 256, 256
      %1569 = vsyncadd [#allocation4], %s1568
      %s1570 = sshll.u32 [#allocation8], 4
      %s1571 = int_to_ptr.vmem [resolvable:$true] %s1570
      %1576 = dma.vmem_to_hbm [thread:$0]  %s1571, 256, %s3, [#allocation4], 128, 128, 8
    $region29: #{tpu_custom_call.1} parent=1 // pred_fallthru
      _
    // Predicated region
    $region30: #{tpu_custom_call.1} parent=1 // pred_check
      _
    $region31: #{tpu_custom_call.1} parent=1 // pred_check_branch
      %1578 = sbr.rel (0) target = $region33
    $region32: #{tpu_custom_call.1} parent=1 // pred_region
      %1579 = dma.done [#allocation4], 256
    $region33: #{tpu_custom_call.1} parent=1 // pred_fallthru
      _
    %1580 = vsyncpa [#allocation3], 1
    %1581 = vsyncpa [#allocation6], 1
    %1582 = vsyncpa [#allocation4], 1

</llo_original>
